<compile_context>
chip_gen: v6e
topology: v6e:2x2x1
jax: 0.10.0
libtpu: 0.0.40
codegen_flags: <defaults>
</compile_context>

<pallas_src>
import functools

import jax
import jax.numpy as jnp
from jax.experimental import pallas as pl
from jax.experimental.pallas import tpu as pltpu

F32 = jnp.float32
VMEM_LIMIT = 48 * 1024 * 1024       # real footprint is < 5 MiB; stays under v7x's 64 MiB


def _round_up(x, m):
    return (x + m - 1) // m * m


def _use_bf16_inputs():
    """bf16 matmul inputs (f32 accumulation) use the native MXU path and halve the
       patch-matrix DMA bytes on v5e/v6e.  Conservative default elsewhere."""
    try:
        kind = jax.devices()[0].device_kind.lower()
        return ("v5" in kind) or ("v6" in kind)
    except Exception:
        return False


# ----------------------------------------------------------------------------------
# Pallas kernels
# ----------------------------------------------------------------------------------

def _convt_bn_lrelu_kernel(p_ref, w_ref, g_ref, bt_ref, o_ref,
                           conv_ref, s1_ref, s2_ref, a_ref, b_ref, *, m_valid, tm):
    """Fused complex transposed-conv (as one real matmul) + complex BatchNorm2d
    (training-mode biased batch stats per column) + LeakyReLU(0.01).

    grid = (phase, M tile):
      phase 0: d = P_tile @ W  -> conv_ref (VMEM resident), accumulate sum / sumsq
      phase 1: (at first tile) fold stats + affine into scale/offset; then
               y = d * a + b, LeakyReLU, store (lane-dense output).

    The conv bias is intentionally omitted: BatchNorm removes any per-channel constant
    shift exactly, and without it the zero-padded rows stay exactly 0 and drop out of
    the statistics (sum over valid rows == sum over all rows).
    """
    # program_id only at the top level of the body (never inside pl.when bodies).
    phase = pl.program_id(0)
    i = pl.program_id(1)
    row0 = i * tm

    is_first = jnp.logical_and(phase == 0, i == 0)
    is_matmul = phase == 0
    is_stats = jnp.logical_and(phase == 1, i == 0)
    is_norm = phase == 1

    @pl.when(is_first)
    def _():
        s1_ref[...] = jnp.zeros_like(s1_ref)
        s2_ref[...] = jnp.zeros_like(s2_ref)

    @pl.when(is_matmul)
    def _():
        # Single full-K matmul; the weight block index is grid-invariant so the
        # (K2p, NP2) tile is DMA'd once and stays in VMEM.
        d = jnp.dot(p_ref[...], w_ref[...], preferred_element_type=jnp.float32)
        conv_ref[pl.ds(row0, tm), :] = d
        s1_ref[...] += jnp.sum(d, axis=0, keepdims=True)
        s2_ref[...] += jnp.sum(d * d, axis=0, keepdims=True)

    @pl.when(is_stats)
    def _():
        # Stats are on the bias-free conv (a shifted formulation), which mitigates the
        # E[x^2]-E[x]^2 cancellation; accumulation is f32 over <= a few thousand rows.
        mean = s1_ref[...] * (1.0 / m_valid)
        var = jnp.maximum(s2_ref[...] * (1.0 / m_valid) - mean * mean, 0.0)
        a = g_ref[...] * jax.lax.rsqrt(var + 1e-5)
        a_ref[...] = a
        b_ref[...] = bt_ref[...] - mean * a

    @pl.when(is_norm)
    def _():
        y = conv_ref[pl.ds(row0, tm), :] * a_ref[...] + b_ref[...]
        o_ref[...] = jnp.where(y >= 0, y, 0.01 * y)


def _convt_mask_kernel(p_ref, w_ref, b_ref, o_ref):
    """Last-layer path: matmul (+ bias) with the bounded tanh mask fused into the
    epilogue:  out = c / (|c| + 1e-8) * tanh(|c|)  (elementwise per component).
    Single K block, no accumulator scratch, direct write into the output block."""
    # TODO(synk): with cout=1 only 2 of 128 output lanes carry real work; a VPU
    # K-reduction would avoid the padded MXU/tanh lanes if this layer ever grows.
    c = jnp.dot(p_ref[...], w_ref[...], preferred_element_type=jnp.float32) + b_ref[...]
    a = jnp.abs(c)
    o_ref[...] = (c / (a + 1e-8)) * jnp.tanh(a)


# ----------------------------------------------------------------------------------
# Pallas-call wrappers
# ----------------------------------------------------------------------------------

def cconvt_bn_lrelu(p2, w2, gamma2, beta2, *, tm=512, use_bf16=False):
    """p2: (M, 2K) = [Pr | Pi];  w2: (2K, 2N) = [[Wr, Wi], [-Wi, Wr]];
       gamma2/beta2: (2N,).  Returns the (M, 2N) normalized + LeakyReLU'd matrix."""
    M, K2 = p2.shape
    N2 = w2.shape[1]
    NP2 = _round_up(N2, 128)
    K2p = _round_up(K2, 128)            # one K block -> weight stays VMEM-resident
    Mp = _round_up(M, tm)
    nm = Mp // tm

    in_dtype = jnp.bfloat16 if use_bf16 else F32
    p2p = jnp.pad(p2, ((0, Mp - M), (0, K2p - K2))).astype(in_dtype)
    w2p = jnp.pad(w2, ((0, K2p - K2), (0, NP2 - N2))).astype(in_dtype)
    g2p = jnp.pad(gamma2, (0, NP2 - N2)).reshape(1, NP2)
    b2p = jnp.pad(beta2, (0, NP2 - N2)).reshape(1, NP2)

    out = pl.pallas_call(
        functools.partial(_convt_bn_lrelu_kernel, m_valid=float(M), tm=tm),
        out_shape=jax.ShapeDtypeStruct((Mp, NP2), F32),
        grid=(2, nm),                                   # (phase, M tile)
        in_specs=[
            # phase 1 does not need the patches: collapse to block 0 (no re-fetch).
            pl.BlockSpec((tm, K2p), lambda p, i: (i * (1 - p), 0)),
            pl.BlockSpec((K2p, NP2), lambda p, i: (0, 0)),
            pl.BlockSpec((1, NP2), lambda p, i: (0, 0)),
            pl.BlockSpec((1, NP2), lambda p, i: (0, 0)),
        ],
        # phase 0 never touches the output window; each block is written exactly once
        # in phase 1 (lane-dense, NP2 multiple of 128).
        out_specs=pl.BlockSpec((tm, NP2), lambda p, i: (i * p, 0)),
        scratch_shapes=[
            pltpu.VMEM((Mp, NP2), F32),    # conv result, VMEM-resident between phases
            pltpu.VMEM((1, NP2), F32),     # sum
            pltpu.VMEM((1, NP2), F32),     # sum of squares
            pltpu.VMEM((1, NP2), F32),     # folded scale
            pltpu.VMEM((1, NP2), F32),     # folded offset
        ],
        compiler_params=pltpu.CompilerParams(
            # phase 1 depends on stats from every phase-0 M tile, so both axes must be
            # "arbitrary"; removing the HBM round trip + second dispatch outweighs the
            # lost megacore split at this problem size.
            dimension_semantics=("arbitrary", "arbitrary"),
            vmem_limit_bytes=VMEM_LIMIT),
    )(p2p, w2p, g2p, b2p)
    return out[:M, :N2]


def cconvt_mask(p2, w2, b2, *, tm=512, use_bf16=False):
    """Last-layer path: (M, 2K) @ (2K, 2N) + bias with the bounded tanh mask fused."""
    M, K2 = p2.shape
    N2 = w2.shape[1]
    NP2 = _round_up(N2, 128)
    K2p = _round_up(K2, 128)
    Mp = _round_up(M, tm)

    in_dtype = jnp.bfloat16 if use_bf16 else F32
    p2p = jnp.pad(p2, ((0, Mp - M), (0, K2p - K2))).astype(in_dtype)
    w2p = jnp.pad(w2, ((0, K2p - K2), (0, NP2 - N2))).astype(in_dtype)
    b2p = jnp.pad(b2, (0, NP2 - N2)).reshape(1, NP2)

    out = pl.pallas_call(
        _convt_mask_kernel,
        out_shape=jax.ShapeDtypeStruct((Mp, NP2), F32),
        grid=(Mp // tm,),
        in_specs=[
            pl.BlockSpec((tm, K2p), lambda i: (i, 0)),
            pl.BlockSpec((K2p, NP2), lambda i: (0, 0)),   # weight grid-invariant
            pl.BlockSpec((1, NP2), lambda i: (0, 0)),
        ],
        out_specs=pl.BlockSpec((tm, NP2), lambda i: (i, 0)),
        compiler_params=pltpu.CompilerParams(
            dimension_semantics=("parallel",),            # independent M tiles (megacore)
            vmem_limit_bytes=VMEM_LIMIT),
    )(p2p, w2p, b2p)
    return out[:M, :N2]


# ----------------------------------------------------------------------------------
# Plain-JAX glue: transposed-conv patch extraction & weight reshaping
# ----------------------------------------------------------------------------------

def _im2col(x, kh, kw, stride):
    """x: (B, C, H, W) -> (B*OH*OW, C*kh*kw), inner column order (C, kh, kw)."""
    B, C, H, W = x.shape
    sh, sw = stride
    oh = (H - kh) // sh + 1
    ow = (W - kw) // sw + 1
    cols = []
    for i in range(kh):
        for j in range(kw):
            cols.append(x[:, :, i:i + sh * (oh - 1) + 1:sh, j:j + sw * (ow - 1) + 1:sw])
    cols = jnp.stack(cols, axis=0).reshape(kh, kw, B, C, oh, ow)
    cols = cols.transpose(2, 4, 5, 3, 0, 1).reshape(B * oh * ow, C * kh * kw)
    return cols, oh, ow


def _convtranspose_patches(x, kh, kw, stride, output_padding):
    """ConvTranspose2d == stride-1 conv over the zero-dilated, (k-1)-padded input
       with a flipped kernel."""
    B, C, H, W = x.shape
    sh, sw = stride
    oph, opw = output_padding
    Hd = (H - 1) * sh + 1
    Wd = (W - 1) * sw + 1
    d = jnp.zeros((B, C, Hd, Wd), x.dtype).at[:, :, ::sh, ::sw].set(x)
    d = jnp.pad(d, ((0, 0), (0, 0), (kh - 1, kh - 1 + oph), (kw - 1, kw - 1 + opw)))
    # TODO(synk): replace the zero-dilated im2col with a stride-phase (sub-pixel)
    # decomposition (or an in-kernel DMA gather) to remove the ~75% structural-zero
    # MACs and the kh*kw HBM expansion; acceptable for this single small Decoder block.
    return _im2col(d, kh, kw, (1, 1))


def _ct_weight_to_matrix(w):
    """(Cin, Cout, kh, kw) ConvTranspose weight -> dense (Cin*kh*kw, Cout) matrix."""
    cin, cout, kh, kw = w.shape
    return jnp.flip(w, axis=(2, 3)).transpose(1, 0, 2, 3).reshape(cout, cin * kh * kw).T


# ----------------------------------------------------------------------------------
# Decoder forward (matches the torch module semantics)
# ----------------------------------------------------------------------------------

def decoder_forward(params, x, *, stride, output_padding=(0, 0), padding=(0, 0),
                    last_layer=False, tm=512, use_bf16=None):
    if use_bf16 is None:
        use_bf16 = _use_bf16_inputs()

    wr, wi = params['wr'], params['wi']
    br, bi = params['br'], params['bi']
    cin, cout, kh, kw = wr.shape
    B = x.shape[0]
    xr, xi = x[..., 0], x[..., 1]

    # One patch extraction for both components: channel-concatenating [xr | xi] makes
    # the flattened K order (component, Cin, kh, kw), i.e. exactly [Pr | Pi].
    x2 = jnp.concatenate([xr, xi], axis=1)
    p2, oh, ow = _convtranspose_patches(x2, kh, kw, stride, output_padding)   # (M, 2K)

    wr_m = _ct_weight_to_matrix(wr)                                 # (K, N)
    wi_m = _ct_weight_to_matrix(wi)
    w2 = jnp.concatenate(
        [jnp.concatenate([wr_m, wi_m], axis=1),
         jnp.concatenate([-wi_m, wr_m], axis=1)], axis=0)           # (2K, 2N)

    if last_layer:
        b2 = jnp.concatenate([br - bi, br + bi])                    # (2N,)
        flat = cconvt_mask(p2, w2, b2, tm=tm, use_bf16=use_bf16)
    else:
        # Conv bias is absorbed exactly by BatchNorm, so it is not materialized here.
        gamma2 = jnp.concatenate([params['gamma_r'], params['gamma_i']])
        beta2 = jnp.concatenate([params['beta_r'], params['beta_i']])
        flat = cconvt_bn_lrelu(p2, w2, gamma2, beta2, tm=tm, use_bf16=use_bf16)

    real = flat[:, :cout]
    imag = flat[:, cout:2 * cout]
    out = jnp.stack([real, imag], axis=-1).reshape(B, oh, ow, cout, 2)
    out = out.transpose(0, 3, 1, 2, 4)                              # (B, Cout, OH, OW, 2)
    ph, pw = padding
    if ph or pw:
        out = out[:, :, ph:oh - ph, pw:ow - pw]
    return out


# ----------------------------------------------------------------------------------
# Deterministic parameter init (shapes / init follow the torch module)
# ----------------------------------------------------------------------------------

def init_decoder_params(key, *, cin, cout, kh, kw):
    ks = jax.random.split(key, 4)
    fan_in, fan_out = cout * kh * kw, cin * kh * kw
    bound_w = (6.0 / (fan_in + fan_out)) ** 0.5                     # xavier_uniform_
    bound_b = 1.0 / (fan_in ** 0.5)
    return {
        'wr': jax.random.uniform(ks[0], (cin, cout, kh, kw), F32, -bound_w, bound_w),
        'wi': jax.random.uniform(ks[1], (cin, cout, kh, kw), F32, -bound_w, bound_w),
        'br': jax.random.uniform(ks[2], (cout,), F32, -bound_b, bound_b),
        'bi': jax.random.uniform(ks[3], (cout,), F32, -bound_b, bound_b),
        'gamma_r': jnp.ones((cout,), F32), 'beta_r': jnp.zeros((cout,), F32),
        'gamma_i': jnp.ones((cout,), F32), 'beta_i': jnp.zeros((cout,), F32),
    }


if __name__ == "__main__":
    key = jax.random.PRNGKey(0)
    k1, k2, k3, k4 = jax.random.split(key, 4)

    # Config A: default Decoder (filter (7,5), stride (2,2), 1 -> 45 ch, BN + LeakyReLU).
    params_a = init_decoder_params(k1, cin=1, cout=45, kh=7, kw=5)
    x_a = jax.random.normal(k2, (2, 1, 16, 16, 2), F32)

    # Config B: last-layer Decoder (bounded tanh mask), 4 -> 1 ch, output_padding (0, 1).
    params_b = init_decoder_params(k3, cin=4, cout=1, kh=7, kw=5)
    x_b = jax.random.normal(k4, (2, 4, 16, 16, 2), F32)

    fwd_a = jax.jit(functools.partial(decoder_forward, stride=(2, 2),
                                      output_padding=(0, 0), last_layer=False))
    fwd_b = jax.jit(functools.partial(decoder_forward, stride=(2, 2),
                                      output_padding=(0, 1), last_layer=True))

    out_a = fwd_a(params_a, x_a)
    out_b = fwd_b(params_b, x_b)
    jax.block_until_ready((out_a, out_b))

    # OH = (H-1)*2 + 7, OW = (W-1)*2 + 5 (+ output_padding)
    assert out_a.shape == (2, 45, 37, 35, 2), out_a.shape
    assert out_b.shape == (2, 1, 37, 36, 2), out_b.shape
    assert bool(jnp.all(jnp.isfinite(out_a))) and bool(jnp.all(jnp.isfinite(out_b)))
    # bounded mask magnitudes must lie in [0, 1)
    assert bool(jnp.all(jnp.abs(out_b) <= 1.0))
    print("KERNEL_OK")
</pallas_src>

<mosaic_0001>
module attributes {stable_mosaic.version = 11 : i64} {
  func.func @_convt_bn_lrelu_kernel(%arg0: i32, %arg1: i32, %arg2: memref<512x128xf32, #tpu.memory_space<vmem>>, %arg3: memref<128x128xf32, #tpu.memory_space<vmem>>, %arg4: memref<1x128xf32, #tpu.memory_space<vmem>>, %arg5: memref<1x128xf32, #tpu.memory_space<vmem>>, %arg6: memref<512x128xf32, #tpu.memory_space<vmem>>, %arg7: memref<3072x128xf32, #tpu.memory_space<vmem>>, %arg8: memref<1x128xf32, #tpu.memory_space<vmem>>, %arg9: memref<1x128xf32, #tpu.memory_space<vmem>>, %arg10: memref<1x128xf32, #tpu.memory_space<vmem>>, %arg11: memref<1x128xf32, #tpu.memory_space<vmem>>) attributes {dimension_semantics = [#tpu.dimension_semantics<arbitrary>, #tpu.dimension_semantics<arbitrary>], iteration_bounds = array<i64: 2, 6>, scalar_prefetch = 0 : i64, scratch_operands = 5 : i64, tpu.core_type = #tpu.core_type<tc>, window_params = [{transform_indices = @transform_0, window_bounds = array<i64: 512, 128>}, {pipeline_mode = #tpu.pipeline_mode<synchronous>, transform_indices = @transform_1, window_bounds = array<i64: 128, 128>}, {pipeline_mode = #tpu.pipeline_mode<synchronous>, transform_indices = @transform_2, window_bounds = array<i64: 1, 128>}, {pipeline_mode = #tpu.pipeline_mode<synchronous>, transform_indices = @transform_3, window_bounds = array<i64: 1, 128>}, {transform_indices = @transform_4, window_bounds = array<i64: 512, 128>}]} {
    %c512_i32 = arith.constant 512 : i32
    %0 = arith.muli %arg1, %c512_i32 : i32
    %c0_i32 = arith.constant 0 : i32
    %1 = arith.cmpi eq, %arg0, %c0_i32 : i32
    %c0_i32_0 = arith.constant 0 : i32
    %2 = arith.cmpi eq, %arg1, %c0_i32_0 : i32
    %3 = arith.andi %1, %2 : i1
    %c0_i32_1 = arith.constant 0 : i32
    %4 = arith.cmpi eq, %arg0, %c0_i32_1 : i32
    %c1_i32 = arith.constant 1 : i32
    %5 = arith.cmpi eq, %arg0, %c1_i32 : i32
    %c0_i32_2 = arith.constant 0 : i32
    %6 = arith.cmpi eq, %arg1, %c0_i32_2 : i32
    %7 = arith.andi %5, %6 : i1
    %c1_i32_3 = arith.constant 1 : i32
    %8 = arith.cmpi eq, %arg0, %c1_i32_3 : i32
    %9 = arith.extui %3 : i1 to i32
    %c0_i32_4 = arith.constant 0 : i32
    %10 = arith.cmpi ne, %9, %c0_i32_4 : i32
    scf.if %10 {
      %cst = arith.constant 0.000000e+00 : f32
      %17 = vector.broadcast %cst : f32 to vector<1x128xf32>
      %c0 = arith.constant 0 : index
      %c0_8 = arith.constant 0 : index
      %18 = vector.load %arg8[%c0, %c0_8] : memref<1x128xf32, #tpu.memory_space<vmem>>, vector<1x128xf32>
      tpu.vector_store %arg8[%c0, %c0_8], %17 {strides = array<i32>} : memref<1x128xf32, #tpu.memory_space<vmem>>, vector<1x128xf32>,
      %cst_9 = arith.constant 0.000000e+00 : f32
      %19 = vector.broadcast %cst_9 : f32 to vector<1x128xf32>
      %c0_10 = arith.constant 0 : index
      %c0_11 = arith.constant 0 : index
      %20 = vector.load %arg9[%c0_10, %c0_11] : memref<1x128xf32, #tpu.memory_space<vmem>>, vector<1x128xf32>
      tpu.vector_store %arg9[%c0_10, %c0_11], %19 {strides = array<i32>} : memref<1x128xf32, #tpu.memory_space<vmem>>, vector<1x128xf32>,
    } else {
    }
    %11 = arith.extui %4 : i1 to i32
    %c0_i32_5 = arith.constant 0 : i32
    %12 = arith.cmpi ne, %11, %c0_i32_5 : i32
    scf.if %12 {
      %c0 = arith.constant 0 : index
      %c0_8 = arith.constant 0 : index
      %17 = vector.load %arg2[%c0, %c0_8] : memref<512x128xf32, #tpu.memory_space<vmem>>, vector<512x128xf32>
      %c0_9 = arith.constant 0 : index
      %c0_10 = arith.constant 0 : index
      %18 = vector.load %arg3[%c0_9, %c0_10] : memref<128x128xf32, #tpu.memory_space<vmem>>, vector<128x128xf32>
      %cst = arith.constant dense<0.000000e+00> : vector<512x128xf32>
      %19 = tpu.matmul %17, %18, %cst {dimension_numbers = #tpu.dot_dimension_numbers<[1], [0], [0], [1], [0, 0, 1, 1], [], []>} : vector<512x128xf32>, vector<128x128xf32>, vector<512x128xf32> -> vector<512x128xf32>
      %20 = arith.index_cast %0 : i32 to index
      %c0_11 = arith.constant 0 : index
      %21 = vector.load %arg7[%20, %c0_11] : memref<3072x128xf32, #tpu.memory_space<vmem>>, vector<512x128xf32>
      tpu.vector_store %arg7[%20, %c0_11], %19 {strides = array<i32>} : memref<3072x128xf32, #tpu.memory_space<vmem>>, vector<512x128xf32>,
      %c0_12 = arith.constant 0 : index
      %c0_13 = arith.constant 0 : index
      %22 = vector.load %arg8[%c0_12, %c0_13] : memref<1x128xf32, #tpu.memory_space<vmem>>, vector<1x128xf32>
      %cst_14 = arith.constant dense<0.000000e+00> : vector<128xf32>
      %23 = vector.multi_reduction <add>, %19, %cst_14 [0] : vector<512x128xf32> to vector<128xf32>
      %24 = vector.shape_cast %23 : vector<128xf32> to vector<1x128xf32>
      %25 = arith.addf %22, %24 : vector<1x128xf32>
      %c0_15 = arith.constant 0 : index
      %c0_16 = arith.constant 0 : index
      %26 = vector.load %arg8[%c0_15, %c0_16] : memref<1x128xf32, #tpu.memory_space<vmem>>, vector<1x128xf32>
      tpu.vector_store %arg8[%c0_15, %c0_16], %25 {strides = array<i32>} : memref<1x128xf32, #tpu.memory_space<vmem>>, vector<1x128xf32>,
      %c0_17 = arith.constant 0 : index
      %c0_18 = arith.constant 0 : index
      %27 = vector.load %arg9[%c0_17, %c0_18] : memref<1x128xf32, #tpu.memory_space<vmem>>, vector<1x128xf32>
      %28 = arith.mulf %19, %19 : vector<512x128xf32>
      %cst_19 = arith.constant dense<0.000000e+00> : vector<128xf32>
      %29 = vector.multi_reduction <add>, %28, %cst_19 [0] : vector<512x128xf32> to vector<128xf32>
      %30 = vector.shape_cast %29 : vector<128xf32> to vector<1x128xf32>
      %31 = arith.addf %27, %30 : vector<1x128xf32>
      %c0_20 = arith.constant 0 : index
      %c0_21 = arith.constant 0 : index
      %32 = vector.load %arg9[%c0_20, %c0_21] : memref<1x128xf32, #tpu.memory_space<vmem>>, vector<1x128xf32>
      tpu.vector_store %arg9[%c0_20, %c0_21], %31 {strides = array<i32>} : memref<1x128xf32, #tpu.memory_space<vmem>>, vector<1x128xf32>,
    } else {
    }
    %13 = arith.extui %7 : i1 to i32
    %c0_i32_6 = arith.constant 0 : i32
    %14 = arith.cmpi ne, %13, %c0_i32_6 : i32
    scf.if %14 {
      %c0 = arith.constant 0 : index
      %c0_8 = arith.constant 0 : index
      %17 = vector.load %arg8[%c0, %c0_8] : memref<1x128xf32, #tpu.memory_space<vmem>>, vector<1x128xf32>
      %cst = arith.constant 3.86100379E-4 : f32
      %18 = vector.broadcast %cst : f32 to vector<1x128xf32>
      %19 = arith.mulf %17, %18 : vector<1x128xf32>
      %c0_9 = arith.constant 0 : index
      %c0_10 = arith.constant 0 : index
      %20 = vector.load %arg9[%c0_9, %c0_10] : memref<1x128xf32, #tpu.memory_space<vmem>>, vector<1x128xf32>
      %cst_11 = arith.constant 3.86100379E-4 : f32
      %21 = vector.broadcast %cst_11 : f32 to vector<1x128xf32>
      %22 = arith.mulf %20, %21 : vector<1x128xf32>
      %23 = arith.mulf %19, %19 : vector<1x128xf32>
      %24 = arith.subf %22, %23 : vector<1x128xf32>
      %cst_12 = arith.constant 0.000000e+00 : f32
      %25 = vector.broadcast %cst_12 : f32 to vector<1x128xf32>
      %26 = arith.maximumf %24, %25 : vector<1x128xf32>
      %c0_13 = arith.constant 0 : index
      %c0_14 = arith.constant 0 : index
      %27 = vector.load %arg4[%c0_13, %c0_14] : memref<1x128xf32, #tpu.memory_space<vmem>>, vector<1x128xf32>
      %cst_15 = arith.constant 9.99999974E-6 : f32
      %28 = vector.broadcast %cst_15 : f32 to vector<1x128xf32>
      %29 = arith.addf %26, %28 : vector<1x128xf32>
      %30 = math.rsqrt %29 : vector<1x128xf32>
      %31 = arith.mulf %27, %30 : vector<1x128xf32>
      %c0_16 = arith.constant 0 : index
      %c0_17 = arith.constant 0 : index
      %32 = vector.load %arg10[%c0_16, %c0_17] : memref<1x128xf32, #tpu.memory_space<vmem>>, vector<1x128xf32>
      tpu.vector_store %arg10[%c0_16, %c0_17], %31 {strides = array<i32>} : memref<1x128xf32, #tpu.memory_space<vmem>>, vector<1x128xf32>,
      %c0_18 = arith.constant 0 : index
      %c0_19 = arith.constant 0 : index
      %33 = vector.load %arg5[%c0_18, %c0_19] : memref<1x128xf32, #tpu.memory_space<vmem>>, vector<1x128xf32>
      %34 = arith.mulf %19, %31 : vector<1x128xf32>
      %35 = arith.subf %33, %34 : vector<1x128xf32>
      %c0_20 = arith.constant 0 : index
      %c0_21 = arith.constant 0 : index
      %36 = vector.load %arg11[%c0_20, %c0_21] : memref<1x128xf32, #tpu.memory_space<vmem>>, vector<1x128xf32>
      tpu.vector_store %arg11[%c0_20, %c0_21], %35 {strides = array<i32>} : memref<1x128xf32, #tpu.memory_space<vmem>>, vector<1x128xf32>,
    } else {
    }
    %15 = arith.extui %8 : i1 to i32
    %c0_i32_7 = arith.constant 0 : i32
    %16 = arith.cmpi ne, %15, %c0_i32_7 : i32
    scf.if %16 {
      %17 = arith.index_cast %0 : i32 to index
      %c0 = arith.constant 0 : index
      %18 = vector.load %arg7[%17, %c0] : memref<3072x128xf32, #tpu.memory_space<vmem>>, vector<512x128xf32>
      %c0_8 = arith.constant 0 : index
      %c0_9 = arith.constant 0 : index
      %19 = vector.load %arg10[%c0_8, %c0_9] : memref<1x128xf32, #tpu.memory_space<vmem>>, vector<1x128xf32>
      %20 = vector.broadcast %19 : vector<1x128xf32> to vector<512x128xf32>
      %21 = arith.mulf %18, %20 : vector<512x128xf32>
      %c0_10 = arith.constant 0 : index
      %c0_11 = arith.constant 0 : index
      %22 = vector.load %arg11[%c0_10, %c0_11] : memref<1x128xf32, #tpu.memory_space<vmem>>, vector<1x128xf32>
      %23 = vector.broadcast %22 : vector<1x128xf32> to vector<512x128xf32>
      %24 = arith.addf %21, %23 : vector<512x128xf32>
      %cst = arith.constant 0.000000e+00 : f32
      %25 = vector.broadcast %cst : f32 to vector<512x128xf32>
      %26 = arith.cmpf oge, %24, %25 : vector<512x128xf32>
      %cst_12 = arith.constant 0.00999999977 : f32
      %27 = vector.broadcast %cst_12 : f32 to vector<512x128xf32>
      %28 = arith.mulf %27, %24 : vector<512x128xf32>
      %29 = arith.select %26, %24, %28 : vector<512x128xi1>, vector<512x128xf32>
      %c0_13 = arith.constant 0 : index
      %c0_14 = arith.constant 0 : index
      %30 = vector.load %arg6[%c0_13, %c0_14] : memref<512x128xf32, #tpu.memory_space<vmem>>, vector<512x128xf32>
      tpu.vector_store %arg6[%c0_13, %c0_14], %29 {strides = array<i32>} : memref<512x128xf32, #tpu.memory_space<vmem>>, vector<512x128xf32>,
    } else {
    }
    return
  }
  func.func @transform_0(%arg0: i32, %arg1: i32) -> (i32, i32) {
    %c1_i32 = arith.constant 1 : i32
    %0 = arith.subi %c1_i32, %arg0 : i32
    %1 = arith.muli %arg1, %0 : i32
    %c0_i32 = arith.constant 0 : i32
    %c0_i32_0 = arith.constant 0 : i32
    return %1, %c0_i32 : i32, i32
  }
  func.func @transform_1(%arg0: i32, %arg1: i32) -> (i32, i32) {
    %c0_i32 = arith.constant 0 : i32
    %c0_i32_0 = arith.constant 0 : i32
    %c0_i32_1 = arith.constant 0 : i32
    return %c0_i32, %c0_i32_0 : i32, i32
  }
  func.func @transform_2(%arg0: i32, %arg1: i32) -> (i32, i32) {
    %c0_i32 = arith.constant 0 : i32
    %c0_i32_0 = arith.constant 0 : i32
    %c0_i32_1 = arith.constant 0 : i32
    return %c0_i32, %c0_i32_0 : i32, i32
  }
  func.func @transform_3(%arg0: i32, %arg1: i32) -> (i32, i32) {
    %c0_i32 = arith.constant 0 : i32
    %c0_i32_0 = arith.constant 0 : i32
    %c0_i32_1 = arith.constant 0 : i32
    return %c0_i32, %c0_i32_0 : i32, i32
  }
  func.func @transform_4(%arg0: i32, %arg1: i32) -> (i32, i32) {
    %0 = arith.muli %arg1, %arg0 : i32
    %c0_i32 = arith.constant 0 : i32
    %c0_i32_0 = arith.constant 0 : i32
    return %0, %c0_i32 : i32, i32
  }
}

</mosaic_0001>

<llo_original>
// kernel: decoder_forward.1
$region0: #{decoder_forward.1}
  #allocation0 [shape = 'u32[]', space=smem, size = 0x4, offset = 0x4, fixed_abs, tag = 'smem constant byte address 0x4 - core index']
  #allocation1 [shape = 'u32[144,128]{1,0:T(1,128)}', space=vmem, size = 0x12000, scoped, tag = 'internal scratch']
  #allocation2 [shape = 'f32[3072,128]{1,0:T(8,128)}', space=vmem, size = 0x180000, scoped, tag = 'scratch operand']
  #allocation3 [shape = 'f32[1,128]{1,0:T(1,128)}', space=vmem, size = 0x200, scoped, tag = 'scratch operand']
  #allocation4 [shape = 'f32[1,128]{1,0:T(1,128)}', space=vmem, size = 0x200, scoped, tag = 'scratch operand']
  #allocation5 [shape = 'f32[1,128]{1,0:T(1,128)}', space=vmem, size = 0x200, scoped, tag = 'scratch operand']
  #allocation6 [shape = 'f32[1,128]{1,0:T(1,128)}', space=vmem, size = 0x200, scoped, tag = 'scratch operand']
  %s0 = inlined_call_operand.vmem [shape: f32[3072,128], index: 0, kind: input, shape index: {}]
  %s1 = inlined_call_operand.vmem [shape: f32[128,128], index: 1, kind: input, shape index: {}]
  %s2 = inlined_call_operand.vmem [shape: f32[1,128], index: 2, kind: input, shape index: {}]
  %s3 = inlined_call_operand.vmem [shape: f32[1,128], index: 3, kind: input, shape index: {}]
  %s4 = inlined_call_operand.vmem [shape: f32[3072,128], index: 4, kind: output, shape index: {}]
  %s5 = sld [smem:[#allocation0]]
  $region65: #{decoder_forward.1} parent=0
    _
  %s7 = ssub.s32 1, %s5
  %s8 = scalar_select 0, %s7, %s5
  loop: start=0, step=1, limit=14
  $region2: #{decoder_forward.1} parent=0 // loop_pre_header
    _
  $region3: #{decoder_forward.1} parent=0 // loop_header
    %s10 = sphi 0, %s14
    %p11 = scmp.ge.s32.totalorder %s10, 14
    %s17 = sphi 0, %s29
    %s18 = sphi 0, %s25
    %s19 = sphi 0, %s17
    %s20 = sphi 0, %s18
    %s21 = sphi 0, %s19
    %s22 = sphi 0, %s20
    %s36 = sphi 0, %s38
    %s39 = sphi 0, %s36
    %s40 = sphi 0, %s39
    %s56 = sphi 0, %s40
    %s60 = sphi 0, %s60
    %s62 = sphi 0, %s60
    %s63 = sphi 0, %s62
    %s77 = sphi 0, %s63
    %s81 = sphi 0, %s81
    %s83 = sphi 0, %s81
    %s84 = sphi 0, %s83
    %s98 = sphi 0, %s84
    %s102 = sphi 0, %s102
    %s104 = sphi 0, %s102
    %s105 = sphi 0, %s104
    %s119 = sphi 0, %s105
    %s127 = sphi 0, %s129
    %s130 = sphi 0, %s127
    %s131 = sphi 0, %s130
    %s147 = sphi 0, %s131
  $region4: #{decoder_forward.1} parent=0 // loop_header_branch
    %13 = sbr.rel (%p11) target = $region8
  $region5: #{decoder_forward.1} parent=0 // loop_body
    %s15 = ssub.s32 %s10, 1
    %s16 = ssub.s32 %s10, 2
    %s23 = sadd.s32 1, %s18
    %p24 = scmp.ge.s32.totalorder %s23, 6
    %s25 = scalar_select %p24, 0, %s23
    %s26 = sadd.s32 1, %s17
    %s27 = scalar_select %p24, %s26, %s17
    %p28 = scmp.ge.s32.totalorder %s27, 2
    %s29 = scalar_select %p28, 0, %s27
    %s30 = ssub.s32 1, %s17
    %s31 = smul.u32 %s18, %s30
    %s32 = ssub.s32 1, %s29
    %s33 = smul.u32 %s25, %s32
    %s34 = ssub.s32 %s31, %s33
    %p35 = scmp.eq.s32.totalorder %s34, 0
    %s37 = sadd.s32 %s36, 1
    %s38 = scalar_select %p35, %s36, %s37
    %p41 = pneg %p35
    %p42 = scmp.eq.s32.totalorder %s10, 11
    %p43 = por %p41, %p42
    %p44 = scmp.ne.s32.totalorder %s36, %s39
    %p45 = scmp.eq.s32.totalorder %s10, 0
    %p46 = por %p44, %p45
    %p47 = scmp.ne.s32.totalorder %s36, %s39
    %p48 = scmp.eq.s32.totalorder %s15, 11
    %p49 = por %p47, %p48
    %p50 = scmp.ne.s32.totalorder %s39, %s40
    %p51 = scmp.eq.s32.totalorder %s15, 0
    %p52 = por %p50, %p51
    %p53 = scmp.ne.s32.totalorder %s39, %s40
    %p54 = scmp.eq.s32.totalorder %s16, 11
    %p55 = por %p53, %p54
    %p57 = scmp.ne.s32.totalorder %s40, %s56
    %p58 = scmp.eq.s32.totalorder %s16, 0
    %p59 = por %p57, %p58
    %s61 = sadd.s32 %s60, 1
    %p64 = scmp.eq.s32.totalorder %s10, 11
    %p65 = scmp.ne.s32.totalorder %s60, %s62
    %p66 = scmp.eq.s32.totalorder %s10, 0
    %p67 = por %p65, %p66
    %p68 = scmp.ne.s32.totalorder %s60, %s62
    %p69 = scmp.eq.s32.totalorder %s15, 11
    %p70 = por %p68, %p69
    %p71 = scmp.ne.s32.totalorder %s62, %s63
    %p72 = scmp.eq.s32.totalorder %s15, 0
    %p73 = por %p71, %p72
    %p74 = scmp.ne.s32.totalorder %s62, %s63
    %p75 = scmp.eq.s32.totalorder %s16, 11
    %p76 = por %p74, %p75
    %p78 = scmp.ne.s32.totalorder %s63, %s77
    %p79 = scmp.eq.s32.totalorder %s16, 0
    %p80 = por %p78, %p79
    %s82 = sadd.s32 %s81, 1
    %p85 = scmp.eq.s32.totalorder %s10, 11
    %p86 = scmp.ne.s32.totalorder %s81, %s83
    %p87 = scmp.eq.s32.totalorder %s10, 0
    %p88 = por %p86, %p87
    %p89 = scmp.ne.s32.totalorder %s81, %s83
    %p90 = scmp.eq.s32.totalorder %s15, 11
    %p91 = por %p89, %p90
    %p92 = scmp.ne.s32.totalorder %s83, %s84
    %p93 = scmp.eq.s32.totalorder %s15, 0
    %p94 = por %p92, %p93
    %p95 = scmp.ne.s32.totalorder %s83, %s84
    %p96 = scmp.eq.s32.totalorder %s16, 11
    %p97 = por %p95, %p96
    %p99 = scmp.ne.s32.totalorder %s84, %s98
    %p100 = scmp.eq.s32.totalorder %s16, 0
    %p101 = por %p99, %p100
    %s103 = sadd.s32 %s102, 1
    %p106 = scmp.eq.s32.totalorder %s10, 11
    %p107 = scmp.ne.s32.totalorder %s102, %s104
    %p108 = scmp.eq.s32.totalorder %s10, 0
    %p109 = por %p107, %p108
    %p110 = scmp.ne.s32.totalorder %s102, %s104
    %p111 = scmp.eq.s32.totalorder %s15, 11
    %p112 = por %p110, %p111
    %p113 = scmp.ne.s32.totalorder %s104, %s105
    %p114 = scmp.eq.s32.totalorder %s15, 0
    %p115 = por %p113, %p114
    %p116 = scmp.ne.s32.totalorder %s104, %s105
    %p117 = scmp.eq.s32.totalorder %s16, 11
    %p118 = por %p116, %p117
    %p120 = scmp.ne.s32.totalorder %s105, %s119
    %p121 = scmp.eq.s32.totalorder %s16, 0
    %p122 = por %p120, %p121
    %s123 = smul.u32 %s18, %s17
    %s124 = smul.u32 %s25, %s29
    %s125 = ssub.s32 %s123, %s124
    %p126 = scmp.eq.s32.totalorder %s125, 0
    %s128 = sadd.s32 %s127, 1
    %s129 = scalar_select %p126, %s127, %s128
    %p132 = pneg %p126
    %p133 = scmp.eq.s32.totalorder %s10, 11
    %p134 = por %p132, %p133
    %p135 = scmp.ne.s32.totalorder %s127, %s130
    %p136 = scmp.eq.s32.totalorder %s10, 0
    %p137 = por %p135, %p136
    %p138 = scmp.ne.s32.totalorder %s127, %s130
    %p139 = scmp.eq.s32.totalorder %s15, 11
    %p140 = por %p138, %p139
    %p141 = scmp.ne.s32.totalorder %s130, %s131
    %p142 = scmp.eq.s32.totalorder %s15, 0
    %p143 = por %p141, %p142
    %p144 = scmp.ne.s32.totalorder %s130, %s131
    %p145 = scmp.eq.s32.totalorder %s16, 11
    %p146 = por %p144, %p145
    %p148 = scmp.ne.s32.totalorder %s131, %s147
    %p149 = scmp.eq.s32.totalorder %s16, 0
    %p150 = por %p148, %p149
    %p151 = scmp.le.s32.totalorder 1, %s10
    %p152 = scmp.lt.s32.totalorder %s10, 13
    %p153 = pnand %p151, %p152
    %p154 = pneg %p153
    // Predicated region
    $region9: #{decoder_forward.1} parent=5 // pred_check
      _
    $region10: #{decoder_forward.1} parent=5 // pred_check_branch
      %156 = sbr.rel (%p153) target = $region12
    $region11: #{decoder_forward.1} parent=5 // pred_region
      %s157 = ssub.s32 %s10, 1
      // Predicated region
      $region13: #{decoder_forward.1} parent=11 // pred_check
        %p158 = pneg %p73
      $region14: #{decoder_forward.1} parent=11 // pred_check_branch
        %160 = sbr.rel (%p158) target = $region16
      $region15: #{decoder_forward.1} parent=11 // pred_region
        _
      $region16: #{decoder_forward.1} parent=11 // pred_fallthru
        _
      // Predicated region
      $region17: #{decoder_forward.1} parent=11 // pred_check
        %p161 = pneg %p94
      $region18: #{decoder_forward.1} parent=11 // pred_check_branch
        %163 = sbr.rel (%p161) target = $region20
      $region19: #{decoder_forward.1} parent=11 // pred_region
        _
      $region20: #{decoder_forward.1} parent=11 // pred_fallthru
        _
      // Predicated region
      $region21: #{decoder_forward.1} parent=11 // pred_check
        %p164 = pneg %p115
      $region22: #{decoder_forward.1} parent=11 // pred_check_branch
        %166 = sbr.rel (%p164) target = $region24
      $region23: #{decoder_forward.1} parent=11 // pred_region
        _
      $region24: #{decoder_forward.1} parent=11 // pred_fallthru
        _
    $region12: #{decoder_forward.1} parent=5 // pred_fallthru
      _
    %p167 = scmp.lt.s32.totalorder %s10, 12
    // Predicated region
    $region25: #{decoder_forward.1} parent=5 // pred_check
      %p168 = pneg %p167
    $region26: #{decoder_forward.1} parent=5 // pred_check_branch
      %170 = sbr.rel (%p168) target = $region28
    $region27: #{decoder_forward.1} parent=5 // pred_region
      // Predicated region
      $region29: #{decoder_forward.1} parent=27 // pred_check
        %p171 = pneg %p46
      $region30: #{decoder_forward.1} parent=27 // pred_check_branch
        %173 = sbr.rel (%p171) target = $region32
      $region31: #{decoder_forward.1} parent=27 // pred_region
        %s174 = ssub.s32 1, %s17
        %s175 = smul.u32 %s18, %s174
        %s176 = smul.u32 64, %s175
        %p177 = scmp.lt.s32.totalorder %s176, 383
        %s178 = scalar_select %p177, %s176, 383
        %s179 = smul.addr %s178, 8
        %s180 = scalar_lea.vmem %s0, %s179
        %s181 = ssub.s32 1, %s17
        %s182 = smul.u32 %s18, %s181
        %s183 = smul.u32 64, %s182
      $region32: #{decoder_forward.1} parent=27 // pred_fallthru
        _
    $region28: #{decoder_forward.1} parent=5 // pred_fallthru
      _
    %p184 = scmp.le.s32.totalorder 1, %s10
    %p185 = scmp.lt.s32.totalorder %s10, 13
    %p186 = pnand %p184, %p185
    %p187 = pneg %p186
    // Predicated region
    $region33: #{decoder_forward.1} parent=5 // pred_check
      _
    $region34: #{decoder_forward.1} parent=5 // pred_check_branch
      %189 = sbr.rel (%p186) target = $region36
    $region35: #{decoder_forward.1} parent=5 // pred_region
      %s190 = ssub.s32 %s10, 1
      %s191 = ssub.s32 1, %s19
      %s192 = smul.u32 %s20, %s191
      %s193 = smul.u32 64, %s192
      %p194 = scmp.lt.s32.totalorder %s193, 383
      %s195 = scalar_select %p194, %s193, 383
      %s196 = smul.addr %s195, 8
      %s197 = scalar_lea.vmem %s0, %s196
      %p198 = pneg %p52
      %p199 = pneg %p49
      %p200 = pneg %p73
      %p201 = pneg %p70
      %p202 = pneg %p94
      %p203 = pneg %p91
      %p204 = pneg %p115
      %p205 = pneg %p112
      %p206 = pneg %p143
      %p207 = pneg %p140
      %s208 = smul.u32 %s20, %s19
      %s209 = smul.u32 64, %s208
      %p210 = scmp.lt.s32.totalorder %s209, 383
      %s211 = scalar_select %p210, %s209, 383
      %s212 = smul.addr %s211, 8
      %s213 = scalar_lea.vmem %s4, %s212
      %s214 = ssub.s32 1, %s19
      %s215 = smul.u32 %s20, %s214
      %s216 = smul.u32 64, %s215
      %p217 = scmp.lt.s32.totalorder %s216, 383
      %s218 = scalar_select %p217, %s216, 383
      %s219 = smul.addr %s218, 8
      %s220 = scalar_lea.vmem %s0, %s219
      %s221 = ssub.s32 1, %s19
      %s222 = smul.u32 %s20, %s221
      %s223 = smul.u32 64, %s222
      %s224 = smul.u32 %s20, %s19
      %s225 = smul.u32 64, %s224
      %p226 = scmp.lt.s32.totalorder %s225, 383
      %s227 = scalar_select %p226, %s225, 383
      %s228 = smul.addr %s227, 8
      %s229 = scalar_lea.vmem %s4, %s228
      %s230 = smul.u32 %s20, %s19
      %s231 = smul.u32 64, %s230
      %s232 = smul.u32 %s20, 512
      %p233 = scmp.eq.s32.totalorder %s19, 0
      %p234 = scmp.eq.s32.totalorder %s20, 0
      %p235 = pnand %p233, %p234
      %p236 = pneg %p235
      %p237 = scmp.eq.s32.totalorder %s19, 1
      %p238 = pnand %p237, %p234
      %p239 = pneg %p238
      // Predicated region
      $region37: #{decoder_forward.1} parent=35 // pred_check
        _
      $region38: #{decoder_forward.1} parent=35 // pred_check_branch
        %241 = sbr.rel (%p235) target = $region40
      $region39: #{decoder_forward.1} parent=35 // pred_region
        %242 = vst [vmem:[#allocation3] sm:$0x1] 0.0
        %243 = vst [vmem:[#allocation4] sm:$0x1] 0.0
      $region40: #{decoder_forward.1} parent=35 // pred_fallthru
        _
      // Predicated region
      $region41: #{decoder_forward.1} parent=35 // pred_check
        %p244 = pneg %p233
      $region42: #{decoder_forward.1} parent=35 // pred_check_branch
        %246 = sbr.rel (%p244) target = $region44
      $region43: #{decoder_forward.1} parent=35 // pred_region
        %v247 = vld [vmem:[%s220] sm:$0xff]
        %v248 = vld [vmem:[%s220 + $0x8] sm:$0xff]
        %v249 = vld [vmem:[%s220 + $0x10] sm:$0xff]
        %v250 = vld [vmem:[%s220 + $0x18] sm:$0xff]
        %v251 = vld [vmem:[%s220 + $0x20] sm:$0xff]
        %v252 = vld [vmem:[%s220 + $0x28] sm:$0xff]
        %v253 = vld [vmem:[%s220 + $0x30] sm:$0xff]
        %v254 = vld [vmem:[%s220 + $0x38] sm:$0xff]
        %v255 = vld [vmem:[%s220 + $0x40] sm:$0xff]
        %v256 = vld [vmem:[%s220 + $0x48] sm:$0xff]
        %v257 = vld [vmem:[%s220 + $0x50] sm:$0xff]
        %v258 = vld [vmem:[%s220 + $0x58] sm:$0xff]
        %v259 = vld [vmem:[%s220 + $0x60] sm:$0xff]
        %v260 = vld [vmem:[%s220 + $0x68] sm:$0xff]
        %v261 = vld [vmem:[%s220 + $0x70] sm:$0xff]
        %v262 = vld [vmem:[%s220 + $0x78] sm:$0xff]
        %v263 = vld [vmem:[%s220 + $0x80] sm:$0xff]
        %v264 = vld [vmem:[%s220 + $0x88] sm:$0xff]
        %v265 = vld [vmem:[%s220 + $0x90] sm:$0xff]
        %v266 = vld [vmem:[%s220 + $0x98] sm:$0xff]
        %v267 = vld [vmem:[%s220 + $0xa0] sm:$0xff]
        %v268 = vld [vmem:[%s220 + $0xa8] sm:$0xff]
        %v269 = vld [vmem:[%s220 + $0xb0] sm:$0xff]
        %v270 = vld [vmem:[%s220 + $0xb8] sm:$0xff]
        %v271 = vld [vmem:[%s220 + $0xc0] sm:$0xff]
        %v272 = vld [vmem:[%s220 + $0xc8] sm:$0xff]
        %v273 = vld [vmem:[%s220 + $0xd0] sm:$0xff]
        %v274 = vld [vmem:[%s220 + $0xd8] sm:$0xff]
        %v275 = vld [vmem:[%s220 + $0xe0] sm:$0xff]
        %v276 = vld [vmem:[%s220 + $0xe8] sm:$0xff]
        %v277 = vld [vmem:[%s220 + $0xf0] sm:$0xff]
        %v278 = vld [vmem:[%s220 + $0xf8] sm:$0xff]
        %v279 = vld [vmem:[%s220 + $0x100] sm:$0xff]
        %v280 = vld [vmem:[%s220 + $0x108] sm:$0xff]
        %v281 = vld [vmem:[%s220 + $0x110] sm:$0xff]
        %v282 = vld [vmem:[%s220 + $0x118] sm:$0xff]
        %v283 = vld [vmem:[%s220 + $0x120] sm:$0xff]
        %v284 = vld [vmem:[%s220 + $0x128] sm:$0xff]
        %v285 = vld [vmem:[%s220 + $0x130] sm:$0xff]
        %v286 = vld [vmem:[%s220 + $0x138] sm:$0xff]
        %v287 = vld [vmem:[%s220 + $0x140] sm:$0xff]
        %v288 = vld [vmem:[%s220 + $0x148] sm:$0xff]
        %v289 = vld [vmem:[%s220 + $0x150] sm:$0xff]
        %v290 = vld [vmem:[%s220 + $0x158] sm:$0xff]
        %v291 = vld [vmem:[%s220 + $0x160] sm:$0xff]
        %v292 = vld [vmem:[%s220 + $0x168] sm:$0xff]
        %v293 = vld [vmem:[%s220 + $0x170] sm:$0xff]
        %v294 = vld [vmem:[%s220 + $0x178] sm:$0xff]
        %v295 = vld [vmem:[%s220 + $0x180] sm:$0xff]
        %v296 = vld [vmem:[%s220 + $0x188] sm:$0xff]
        %v297 = vld [vmem:[%s220 + $0x190] sm:$0xff]
        %v298 = vld [vmem:[%s220 + $0x198] sm:$0xff]
        %v299 = vld [vmem:[%s220 + $0x1a0] sm:$0xff]
        %v300 = vld [vmem:[%s220 + $0x1a8] sm:$0xff]
        %v301 = vld [vmem:[%s220 + $0x1b0] sm:$0xff]
        %v302 = vld [vmem:[%s220 + $0x1b8] sm:$0xff]
        %v303 = vld [vmem:[%s220 + $0x1c0] sm:$0xff]
        %v304 = vld [vmem:[%s220 + $0x1c8] sm:$0xff]
        %v305 = vld [vmem:[%s220 + $0x1d0] sm:$0xff]
        %v306 = vld [vmem:[%s220 + $0x1d8] sm:$0xff]
        %v307 = vld [vmem:[%s220 + $0x1e0] sm:$0xff]
        %v308 = vld [vmem:[%s220 + $0x1e8] sm:$0xff]
        %v309 = vld [vmem:[%s220 + $0x1f0] sm:$0xff]
        %v310 = vld [vmem:[%s220 + $0x1f8] sm:$0xff]
        %v311 = vld [vmem:[%s1] sm:$0xff]
        %v312 = vld [vmem:[%s1 + $0x8] sm:$0xff]
        %v313 = vld [vmem:[%s1 + $0x10] sm:$0xff]
        %v314 = vld [vmem:[%s1 + $0x18] sm:$0xff]
        %v315 = vld [vmem:[%s1 + $0x20] sm:$0xff]
        %v316 = vld [vmem:[%s1 + $0x28] sm:$0xff]
        %v317 = vld [vmem:[%s1 + $0x30] sm:$0xff]
        %v318 = vld [vmem:[%s1 + $0x38] sm:$0xff]
        %v319 = vld [vmem:[%s1 + $0x40] sm:$0xff]
        %v320 = vld [vmem:[%s1 + $0x48] sm:$0xff]
        %v321 = vld [vmem:[%s1 + $0x50] sm:$0xff]
        %v322 = vld [vmem:[%s1 + $0x58] sm:$0xff]
        %v323 = vld [vmem:[%s1 + $0x60] sm:$0xff]
        %v324 = vld [vmem:[%s1 + $0x68] sm:$0xff]
        %v325 = vld [vmem:[%s1 + $0x70] sm:$0xff]
        %v326 = vld [vmem:[%s1 + $0x78] sm:$0xff]
        %327 = vmatprep.subr.mxu0 0.0
        %328 = vmatpush1.msra.mxu0 %v326
        %329 = vmatprep.subr.mxu0 0.0
        %330 = vmatpush1.msra.mxu0 %v325
        %331 = vmatprep.subr.mxu0 0.0
        %332 = vmatpush1.msra.mxu0 %v324
        %333 = vmatprep.subr.mxu0 0.0
        %334 = vmatpush1.msra.mxu0 %v323
        %335 = vmatprep.subr.mxu0 0.0
        %336 = vmatpush1.msra.mxu0 %v322
        %337 = vmatprep.subr.mxu0 0.0
        %338 = vmatpush1.msra.mxu0 %v321
        %339 = vmatprep.subr.mxu0 0.0
        %340 = vmatpush1.msra.mxu0 %v320
        %341 = vmatprep.subr.mxu0 0.0
        %342 = vmatpush1.msra.mxu0 %v319
        %343 = vmatprep.subr.mxu0 0.0
        %344 = vmatpush1.msra.mxu0 %v318
        %345 = vmatprep.subr.mxu0 0.0
        %346 = vmatpush1.msra.mxu0 %v317
        %347 = vmatprep.subr.mxu0 0.0
        %348 = vmatpush1.msra.mxu0 %v316
        %349 = vmatprep.subr.mxu0 0.0
        %350 = vmatpush1.msra.mxu0 %v315
        %351 = vmatprep.subr.mxu0 0.0
        %352 = vmatpush1.msra.mxu0 %v314
        %353 = vmatprep.subr.mxu0 0.0
        %354 = vmatpush1.msra.mxu0 %v313
        %355 = vmatprep.subr.mxu0 0.0
        %356 = vmatpush1.msra.mxu0 %v312
        %357 = vmatprep.subr.mxu0 0.0
        %358 = vmatpush1.msra.mxu0 %v311
        %359 = vmatprep.subr.mxu0 0.0
        %360 = vmatpush2.msra.mxu0 0.0
        %361 = vmatprep.subr.mxu0 0.0
        %362 = vmatpush2.msra.mxu0 0.0
        %363 = vmatprep.subr.mxu0 0.0
        %364 = vmatpush2.msra.mxu0 0.0
        %365 = vmatprep.subr.mxu0 0.0
        %366 = vmatpush2.msra.mxu0 0.0
        %367 = vmatprep.subr.mxu0 0.0
        %368 = vmatpush2.msra.mxu0 0.0
        %369 = vmatprep.subr.mxu0 0.0
        %370 = vmatpush2.msra.mxu0 0.0
        %371 = vmatprep.subr.mxu0 0.0
        %372 = vmatpush2.msra.mxu0 0.0
        %373 = vmatprep.subr.mxu0 0.0
        %374 = vmatpush2.msra.mxu0 0.0
        %375 = vmatprep.subr.mxu0 0.0
        %376 = vmatpush2.msra.mxu0 0.0
        %377 = vmatprep.subr.mxu0 0.0
        %378 = vmatpush2.msra.mxu0 0.0
        %379 = vmatprep.subr.mxu0 0.0
        %380 = vmatpush2.msra.mxu0 0.0
        %381 = vmatprep.subr.mxu0 0.0
        %382 = vmatpush2.msra.mxu0 0.0
        %383 = vmatprep.subr.mxu0 0.0
        %384 = vmatpush2.msra.mxu0 0.0
        %385 = vmatprep.subr.mxu0 0.0
        %386 = vmatpush2.msra.mxu0 0.0
        %387 = vmatprep.subr.mxu0 0.0
        %388 = vmatpush2.msra.mxu0 0.0
        %389 = vmatprep.subr.mxu0 0.0
        %390 = vmatpush2.msra.mxu0 0.0
        %391 = vmatprep.mubr.f32.mxu0 0.0
        %392 = vmatmul.mubr.f32.gmra.mxu0 %v247
        %v393 = vpop.f32.mrf.mxu0
        %v394 = vadd.f32 0.0, %v393
        %v395 = vpop.f32.mrf.mxu0
        %396 = vmatprep.mubr.f32.mxu0 0.0
        %397 = vmatmul.mubr.f32.gmra.mxu0 %v248
        %v398 = vpop.f32.mrf.mxu0
        %v399 = vadd.f32 0.0, %v398
        %v400 = vpop.f32.mrf.mxu0
        %401 = vmatprep.mubr.f32.mxu0 0.0
        %402 = vmatmul.mubr.f32.gmra.mxu0 %v249
        %v403 = vpop.f32.mrf.mxu0
        %v404 = vadd.f32 0.0, %v403
        %v405 = vpop.f32.mrf.mxu0
        %406 = vmatprep.mubr.f32.mxu0 0.0
        %407 = vmatmul.mubr.f32.gmra.mxu0 %v250
        %v408 = vpop.f32.mrf.mxu0
        %v409 = vadd.f32 0.0, %v408
        %v410 = vpop.f32.mrf.mxu0
        %411 = vmatprep.mubr.f32.mxu0 0.0
        %412 = vmatmul.mubr.f32.gmra.mxu0 %v251
        %v413 = vpop.f32.mrf.mxu0
        %v414 = vadd.f32 0.0, %v413
        %v415 = vpop.f32.mrf.mxu0
        %416 = vmatprep.mubr.f32.mxu0 0.0
        %417 = vmatmul.mubr.f32.gmra.mxu0 %v252
        %v418 = vpop.f32.mrf.mxu0
        %v419 = vadd.f32 0.0, %v418
        %v420 = vpop.f32.mrf.mxu0
        %421 = vmatprep.mubr.f32.mxu0 0.0
        %422 = vmatmul.mubr.f32.gmra.mxu0 %v253
        %v423 = vpop.f32.mrf.mxu0
        %v424 = vadd.f32 0.0, %v423
        %v425 = vpop.f32.mrf.mxu0
        %426 = vmatprep.mubr.f32.mxu0 0.0
        %427 = vmatmul.mubr.f32.gmra.mxu0 %v254
        %v428 = vpop.f32.mrf.mxu0
        %v429 = vadd.f32 0.0, %v428
        %v430 = vpop.f32.mrf.mxu0
        %431 = vmatprep.mubr.f32.mxu0 0.0
        %432 = vmatmul.mubr.f32.gmra.mxu0 %v255
        %v433 = vpop.f32.mrf.mxu0
        %v434 = vadd.f32 0.0, %v433
        %v435 = vpop.f32.mrf.mxu0
        %436 = vmatprep.mubr.f32.mxu0 0.0
        %437 = vmatmul.mubr.f32.gmra.mxu0 %v256
        %v438 = vpop.f32.mrf.mxu0
        %v439 = vadd.f32 0.0, %v438
        %v440 = vpop.f32.mrf.mxu0
        %441 = vmatprep.mubr.f32.mxu0 0.0
        %442 = vmatmul.mubr.f32.gmra.mxu0 %v257
        %v443 = vpop.f32.mrf.mxu0
        %v444 = vadd.f32 0.0, %v443
        %v445 = vpop.f32.mrf.mxu0
        %446 = vmatprep.mubr.f32.mxu0 0.0
        %447 = vmatmul.mubr.f32.gmra.mxu0 %v258
        %v448 = vpop.f32.mrf.mxu0
        %v449 = vadd.f32 0.0, %v448
        %v450 = vpop.f32.mrf.mxu0
        %451 = vmatprep.mubr.f32.mxu0 0.0
        %452 = vmatmul.mubr.f32.gmra.mxu0 %v259
        %v453 = vpop.f32.mrf.mxu0
        %v454 = vadd.f32 0.0, %v453
        %v455 = vpop.f32.mrf.mxu0
        %456 = vmatprep.mubr.f32.mxu0 0.0
        %457 = vmatmul.mubr.f32.gmra.mxu0 %v260
        %v458 = vpop.f32.mrf.mxu0
        %v459 = vadd.f32 0.0, %v458
        %v460 = vpop.f32.mrf.mxu0
        %461 = vmatprep.mubr.f32.mxu0 0.0
        %462 = vmatmul.mubr.f32.gmra.mxu0 %v261
        %v463 = vpop.f32.mrf.mxu0
        %v464 = vadd.f32 0.0, %v463
        %v465 = vpop.f32.mrf.mxu0
        %466 = vmatprep.mubr.f32.mxu0 0.0
        %467 = vmatmul.mubr.f32.gmra.mxu0 %v262
        %v468 = vpop.f32.mrf.mxu0
        %v469 = vadd.f32 0.0, %v468
        %v470 = vpop.f32.mrf.mxu0
        %471 = vmatprep.mubr.f32.mxu0 0.0
        %472 = vmatmul.mubr.f32.gmra.mxu0 %v263
        %v473 = vpop.f32.mrf.mxu0
        %v474 = vadd.f32 0.0, %v473
        %v475 = vpop.f32.mrf.mxu0
        %476 = vmatprep.mubr.f32.mxu0 0.0
        %477 = vmatmul.mubr.f32.gmra.mxu0 %v264
        %v478 = vpop.f32.mrf.mxu0
        %v479 = vadd.f32 0.0, %v478
        %v480 = vpop.f32.mrf.mxu0
        %481 = vmatprep.mubr.f32.mxu0 0.0
        %482 = vmatmul.mubr.f32.gmra.mxu0 %v265
        %v483 = vpop.f32.mrf.mxu0
        %v484 = vadd.f32 0.0, %v483
        %v485 = vpop.f32.mrf.mxu0
        %486 = vmatprep.mubr.f32.mxu0 0.0
        %487 = vmatmul.mubr.f32.gmra.mxu0 %v266
        %v488 = vpop.f32.mrf.mxu0
        %v489 = vadd.f32 0.0, %v488
        %v490 = vpop.f32.mrf.mxu0
        %491 = vmatprep.mubr.f32.mxu0 0.0
        %492 = vmatmul.mubr.f32.gmra.mxu0 %v267
        %v493 = vpop.f32.mrf.mxu0
        %v494 = vadd.f32 0.0, %v493
        %v495 = vpop.f32.mrf.mxu0
        %496 = vmatprep.mubr.f32.mxu0 0.0
        %497 = vmatmul.mubr.f32.gmra.mxu0 %v268
        %v498 = vpop.f32.mrf.mxu0
        %v499 = vadd.f32 0.0, %v498
        %v500 = vpop.f32.mrf.mxu0
        %501 = vmatprep.mubr.f32.mxu0 0.0
        %502 = vmatmul.mubr.f32.gmra.mxu0 %v269
        %v503 = vpop.f32.mrf.mxu0
        %v504 = vadd.f32 0.0, %v503
        %v505 = vpop.f32.mrf.mxu0
        %506 = vmatprep.mubr.f32.mxu0 0.0
        %507 = vmatmul.mubr.f32.gmra.mxu0 %v270
        %v508 = vpop.f32.mrf.mxu0
        %v509 = vadd.f32 0.0, %v508
        %v510 = vpop.f32.mrf.mxu0
        %511 = vmatprep.mubr.f32.mxu0 0.0
        %512 = vmatmul.mubr.f32.gmra.mxu0 %v271
        %v513 = vpop.f32.mrf.mxu0
        %v514 = vadd.f32 0.0, %v513
        %v515 = vpop.f32.mrf.mxu0
        %516 = vmatprep.mubr.f32.mxu0 0.0
        %517 = vmatmul.mubr.f32.gmra.mxu0 %v272
        %v518 = vpop.f32.mrf.mxu0
        %v519 = vadd.f32 0.0, %v518
        %v520 = vpop.f32.mrf.mxu0
        %521 = vmatprep.mubr.f32.mxu0 0.0
        %522 = vmatmul.mubr.f32.gmra.mxu0 %v273
        %v523 = vpop.f32.mrf.mxu0
        %v524 = vadd.f32 0.0, %v523
        %v525 = vpop.f32.mrf.mxu0
        %526 = vmatprep.mubr.f32.mxu0 0.0
        %527 = vmatmul.mubr.f32.gmra.mxu0 %v274
        %v528 = vpop.f32.mrf.mxu0
        %v529 = vadd.f32 0.0, %v528
        %v530 = vpop.f32.mrf.mxu0
        %531 = vmatprep.mubr.f32.mxu0 0.0
        %532 = vmatmul.mubr.f32.gmra.mxu0 %v275
        %v533 = vpop.f32.mrf.mxu0
        %v534 = vadd.f32 0.0, %v533
        %v535 = vpop.f32.mrf.mxu0
        %536 = vmatprep.mubr.f32.mxu0 0.0
        %537 = vmatmul.mubr.f32.gmra.mxu0 %v276
        %v538 = vpop.f32.mrf.mxu0
        %v539 = vadd.f32 0.0, %v538
        %v540 = vpop.f32.mrf.mxu0
        %541 = vmatprep.mubr.f32.mxu0 0.0
        %542 = vmatmul.mubr.f32.gmra.mxu0 %v277
        %v543 = vpop.f32.mrf.mxu0
        %v544 = vadd.f32 0.0, %v543
        %v545 = vpop.f32.mrf.mxu0
        %546 = vmatprep.mubr.f32.mxu0 0.0
        %547 = vmatmul.mubr.f32.gmra.mxu0 %v278
        %v548 = vpop.f32.mrf.mxu0
        %v549 = vadd.f32 0.0, %v548
        %v550 = vpop.f32.mrf.mxu0
        %551 = vmatprep.mubr.f32.mxu0 0.0
        %552 = vmatmul.mubr.f32.gmra.mxu0 %v279
        %v553 = vpop.f32.mrf.mxu0
        %v554 = vadd.f32 0.0, %v553
        %v555 = vpop.f32.mrf.mxu0
        %556 = vmatprep.mubr.f32.mxu0 0.0
        %557 = vmatmul.mubr.f32.gmra.mxu0 %v280
        %v558 = vpop.f32.mrf.mxu0
        %v559 = vadd.f32 0.0, %v558
        %v560 = vpop.f32.mrf.mxu0
        %561 = vmatprep.mubr.f32.mxu0 0.0
        %562 = vmatmul.mubr.f32.gmra.mxu0 %v281
        %v563 = vpop.f32.mrf.mxu0
        %v564 = vadd.f32 0.0, %v563
        %v565 = vpop.f32.mrf.mxu0
        %566 = vmatprep.mubr.f32.mxu0 0.0
        %567 = vmatmul.mubr.f32.gmra.mxu0 %v282
        %v568 = vpop.f32.mrf.mxu0
        %v569 = vadd.f32 0.0, %v568
        %v570 = vpop.f32.mrf.mxu0
        %571 = vmatprep.mubr.f32.mxu0 0.0
        %572 = vmatmul.mubr.f32.gmra.mxu0 %v283
        %v573 = vpop.f32.mrf.mxu0
        %v574 = vadd.f32 0.0, %v573
        %v575 = vpop.f32.mrf.mxu0
        %576 = vmatprep.mubr.f32.mxu0 0.0
        %577 = vmatmul.mubr.f32.gmra.mxu0 %v284
        %v578 = vpop.f32.mrf.mxu0
        %v579 = vadd.f32 0.0, %v578
        %v580 = vpop.f32.mrf.mxu0
        %581 = vmatprep.mubr.f32.mxu0 0.0
        %582 = vmatmul.mubr.f32.gmra.mxu0 %v285
        %v583 = vpop.f32.mrf.mxu0
        %v584 = vadd.f32 0.0, %v583
        %v585 = vpop.f32.mrf.mxu0
        %586 = vmatprep.mubr.f32.mxu0 0.0
        %587 = vmatmul.mubr.f32.gmra.mxu0 %v286
        %v588 = vpop.f32.mrf.mxu0
        %v589 = vadd.f32 0.0, %v588
        %v590 = vpop.f32.mrf.mxu0
        %591 = vmatprep.mubr.f32.mxu0 0.0
        %592 = vmatmul.mubr.f32.gmra.mxu0 %v287
        %v593 = vpop.f32.mrf.mxu0
        %v594 = vadd.f32 0.0, %v593
        %v595 = vpop.f32.mrf.mxu0
        %596 = vmatprep.mubr.f32.mxu0 0.0
        %597 = vmatmul.mubr.f32.gmra.mxu0 %v288
        %v598 = vpop.f32.mrf.mxu0
        %v599 = vadd.f32 0.0, %v598
        %v600 = vpop.f32.mrf.mxu0
        %601 = vmatprep.mubr.f32.mxu0 0.0
        %602 = vmatmul.mubr.f32.gmra.mxu0 %v289
        %v603 = vpop.f32.mrf.mxu0
        %v604 = vadd.f32 0.0, %v603
        %v605 = vpop.f32.mrf.mxu0
        %606 = vmatprep.mubr.f32.mxu0 0.0
        %607 = vmatmul.mubr.f32.gmra.mxu0 %v290
        %v608 = vpop.f32.mrf.mxu0
        %v609 = vadd.f32 0.0, %v608
        %v610 = vpop.f32.mrf.mxu0
        %611 = vmatprep.mubr.f32.mxu0 0.0
        %612 = vmatmul.mubr.f32.gmra.mxu0 %v291
        %v613 = vpop.f32.mrf.mxu0
        %v614 = vadd.f32 0.0, %v613
        %v615 = vpop.f32.mrf.mxu0
        %616 = vmatprep.mubr.f32.mxu0 0.0
        %617 = vmatmul.mubr.f32.gmra.mxu0 %v292
        %v618 = vpop.f32.mrf.mxu0
        %v619 = vadd.f32 0.0, %v618
        %v620 = vpop.f32.mrf.mxu0
        %621 = vmatprep.mubr.f32.mxu0 0.0
        %622 = vmatmul.mubr.f32.gmra.mxu0 %v293
        %v623 = vpop.f32.mrf.mxu0
        %v624 = vadd.f32 0.0, %v623
        %v625 = vpop.f32.mrf.mxu0
        %626 = vmatprep.mubr.f32.mxu0 0.0
        %627 = vmatmul.mubr.f32.gmra.mxu0 %v294
        %v628 = vpop.f32.mrf.mxu0
        %v629 = vadd.f32 0.0, %v628
        %v630 = vpop.f32.mrf.mxu0
        %631 = vmatprep.mubr.f32.mxu0 0.0
        %632 = vmatmul.mubr.f32.gmra.mxu0 %v295
        %v633 = vpop.f32.mrf.mxu0
        %v634 = vadd.f32 0.0, %v633
        %v635 = vpop.f32.mrf.mxu0
        %636 = vmatprep.mubr.f32.mxu0 0.0
        %637 = vmatmul.mubr.f32.gmra.mxu0 %v296
        %v638 = vpop.f32.mrf.mxu0
        %v639 = vadd.f32 0.0, %v638
        %v640 = vpop.f32.mrf.mxu0
        %641 = vmatprep.mubr.f32.mxu0 0.0
        %642 = vmatmul.mubr.f32.gmra.mxu0 %v297
        %v643 = vpop.f32.mrf.mxu0
        %v644 = vadd.f32 0.0, %v643
        %v645 = vpop.f32.mrf.mxu0
        %646 = vmatprep.mubr.f32.mxu0 0.0
        %647 = vmatmul.mubr.f32.gmra.mxu0 %v298
        %v648 = vpop.f32.mrf.mxu0
        %v649 = vadd.f32 0.0, %v648
        %v650 = vpop.f32.mrf.mxu0
        %651 = vmatprep.mubr.f32.mxu0 0.0
        %652 = vmatmul.mubr.f32.gmra.mxu0 %v299
        %v653 = vpop.f32.mrf.mxu0
        %v654 = vadd.f32 0.0, %v653
        %v655 = vpop.f32.mrf.mxu0
        %656 = vmatprep.mubr.f32.mxu0 0.0
        %657 = vmatmul.mubr.f32.gmra.mxu0 %v300
        %v658 = vpop.f32.mrf.mxu0
        %v659 = vadd.f32 0.0, %v658
        %v660 = vpop.f32.mrf.mxu0
        %661 = vmatprep.mubr.f32.mxu0 0.0
        %662 = vmatmul.mubr.f32.gmra.mxu0 %v301
        %v663 = vpop.f32.mrf.mxu0
        %v664 = vadd.f32 0.0, %v663
        %v665 = vpop.f32.mrf.mxu0
        %666 = vmatprep.mubr.f32.mxu0 0.0
        %667 = vmatmul.mubr.f32.gmra.mxu0 %v302
        %v668 = vpop.f32.mrf.mxu0
        %v669 = vadd.f32 0.0, %v668
        %v670 = vpop.f32.mrf.mxu0
        %671 = vmatprep.mubr.f32.mxu0 0.0
        %672 = vmatmul.mubr.f32.gmra.mxu0 %v303
        %v673 = vpop.f32.mrf.mxu0
        %v674 = vadd.f32 0.0, %v673
        %v675 = vpop.f32.mrf.mxu0
        %676 = vmatprep.mubr.f32.mxu0 0.0
        %677 = vmatmul.mubr.f32.gmra.mxu0 %v304
        %v678 = vpop.f32.mrf.mxu0
        %v679 = vadd.f32 0.0, %v678
        %v680 = vpop.f32.mrf.mxu0
        %681 = vmatprep.mubr.f32.mxu0 0.0
        %682 = vmatmul.mubr.f32.gmra.mxu0 %v305
        %v683 = vpop.f32.mrf.mxu0
        %v684 = vadd.f32 0.0, %v683
        %v685 = vpop.f32.mrf.mxu0
        %686 = vmatprep.mubr.f32.mxu0 0.0
        %687 = vmatmul.mubr.f32.gmra.mxu0 %v306
        %v688 = vpop.f32.mrf.mxu0
        %v689 = vadd.f32 0.0, %v688
        %v690 = vpop.f32.mrf.mxu0
        %691 = vmatprep.mubr.f32.mxu0 0.0
        %692 = vmatmul.mubr.f32.gmra.mxu0 %v307
        %v693 = vpop.f32.mrf.mxu0
        %v694 = vadd.f32 0.0, %v693
        %v695 = vpop.f32.mrf.mxu0
        %696 = vmatprep.mubr.f32.mxu0 0.0
        %697 = vmatmul.mubr.f32.gmra.mxu0 %v308
        %v698 = vpop.f32.mrf.mxu0
        %v699 = vadd.f32 0.0, %v698
        %v700 = vpop.f32.mrf.mxu0
        %701 = vmatprep.mubr.f32.mxu0 0.0
        %702 = vmatmul.mubr.f32.gmra.mxu0 %v309
        %v703 = vpop.f32.mrf.mxu0
        %v704 = vadd.f32 0.0, %v703
        %v705 = vpop.f32.mrf.mxu0
        %706 = vmatprep.mubr.f32.mxu0 0.0
        %707 = vmatmul.mubr.f32.gmra.mxu0 %v310
        %v708 = vpop.f32.mrf.mxu0
        %v709 = vadd.f32 0.0, %v708
        %v710 = vpop.f32.mrf.mxu0
        %711 = vdwg.mxu0
        %s712 = scalar_lea.vmem [#allocation2], %s232
        %713 = vst [vmem:[%s712] sm:$0xff] %v394
        %714 = vst [vmem:[%s712 + $0x8] sm:$0xff] %v399
        %715 = vst [vmem:[%s712 + $0x10] sm:$0xff] %v404
        %716 = vst [vmem:[%s712 + $0x18] sm:$0xff] %v409
        %717 = vst [vmem:[%s712 + $0x20] sm:$0xff] %v414
        %718 = vst [vmem:[%s712 + $0x28] sm:$0xff] %v419
        %719 = vst [vmem:[%s712 + $0x30] sm:$0xff] %v424
        %720 = vst [vmem:[%s712 + $0x38] sm:$0xff] %v429
        %721 = vst [vmem:[%s712 + $0x40] sm:$0xff] %v434
        %722 = vst [vmem:[%s712 + $0x48] sm:$0xff] %v439
        %723 = vst [vmem:[%s712 + $0x50] sm:$0xff] %v444
        %724 = vst [vmem:[%s712 + $0x58] sm:$0xff] %v449
        %725 = vst [vmem:[%s712 + $0x60] sm:$0xff] %v454
        %726 = vst [vmem:[%s712 + $0x68] sm:$0xff] %v459
        %727 = vst [vmem:[%s712 + $0x70] sm:$0xff] %v464
        %728 = vst [vmem:[%s712 + $0x78] sm:$0xff] %v469
        %729 = vst [vmem:[%s712 + $0x80] sm:$0xff] %v474
        %730 = vst [vmem:[%s712 + $0x88] sm:$0xff] %v479
        %731 = vst [vmem:[%s712 + $0x90] sm:$0xff] %v484
        %732 = vst [vmem:[%s712 + $0x98] sm:$0xff] %v489
        %733 = vst [vmem:[%s712 + $0xa0] sm:$0xff] %v494
        %734 = vst [vmem:[%s712 + $0xa8] sm:$0xff] %v499
        %735 = vst [vmem:[%s712 + $0xb0] sm:$0xff] %v504
        %736 = vst [vmem:[%s712 + $0xb8] sm:$0xff] %v509
        %737 = vst [vmem:[%s712 + $0xc0] sm:$0xff] %v514
        %738 = vst [vmem:[%s712 + $0xc8] sm:$0xff] %v519
        %739 = vst [vmem:[%s712 + $0xd0] sm:$0xff] %v524
        %740 = vst [vmem:[%s712 + $0xd8] sm:$0xff] %v529
        %741 = vst [vmem:[%s712 + $0xe0] sm:$0xff] %v534
        %742 = vst [vmem:[%s712 + $0xe8] sm:$0xff] %v539
        %743 = vst [vmem:[%s712 + $0xf0] sm:$0xff] %v544
        %744 = vst [vmem:[%s712 + $0xf8] sm:$0xff] %v549
        %745 = vst [vmem:[%s712 + $0x100] sm:$0xff] %v554
        %746 = vst [vmem:[%s712 + $0x108] sm:$0xff] %v559
        %747 = vst [vmem:[%s712 + $0x110] sm:$0xff] %v564
        %748 = vst [vmem:[%s712 + $0x118] sm:$0xff] %v569
        %749 = vst [vmem:[%s712 + $0x120] sm:$0xff] %v574
        %750 = vst [vmem:[%s712 + $0x128] sm:$0xff] %v579
        %751 = vst [vmem:[%s712 + $0x130] sm:$0xff] %v584
        %752 = vst [vmem:[%s712 + $0x138] sm:$0xff] %v589
        %753 = vst [vmem:[%s712 + $0x140] sm:$0xff] %v594
        %754 = vst [vmem:[%s712 + $0x148] sm:$0xff] %v599
        %755 = vst [vmem:[%s712 + $0x150] sm:$0xff] %v604
        %756 = vst [vmem:[%s712 + $0x158] sm:$0xff] %v609
        %757 = vst [vmem:[%s712 + $0x160] sm:$0xff] %v614
        %758 = vst [vmem:[%s712 + $0x168] sm:$0xff] %v619
        %759 = vst [vmem:[%s712 + $0x170] sm:$0xff] %v624
        %760 = vst [vmem:[%s712 + $0x178] sm:$0xff] %v629
        %761 = vst [vmem:[%s712 + $0x180] sm:$0xff] %v634
        %762 = vst [vmem:[%s712 + $0x188] sm:$0xff] %v639
        %763 = vst [vmem:[%s712 + $0x190] sm:$0xff] %v644
        %764 = vst [vmem:[%s712 + $0x198] sm:$0xff] %v649
        %765 = vst [vmem:[%s712 + $0x1a0] sm:$0xff] %v654
        %766 = vst [vmem:[%s712 + $0x1a8] sm:$0xff] %v659
        %767 = vst [vmem:[%s712 + $0x1b0] sm:$0xff] %v664
        %768 = vst [vmem:[%s712 + $0x1b8] sm:$0xff] %v669
        %769 = vst [vmem:[%s712 + $0x1c0] sm:$0xff] %v674
        %770 = vst [vmem:[%s712 + $0x1c8] sm:$0xff] %v679
        %771 = vst [vmem:[%s712 + $0x1d0] sm:$0xff] %v684
        %772 = vst [vmem:[%s712 + $0x1d8] sm:$0xff] %v689
        %773 = vst [vmem:[%s712 + $0x1e0] sm:$0xff] %v694
        %774 = vst [vmem:[%s712 + $0x1e8] sm:$0xff] %v699
        %775 = vst [vmem:[%s712 + $0x1f0] sm:$0xff] %v704
        %776 = vst [vmem:[%s712 + $0x1f8] sm:$0xff] %v709
        %v777 = vld [vmem:[#allocation3] sm:$0x1]
        %v778 = vadd.f32 %v394, %v399
        %v779 = vadd.f32 %v778, %v404
        %v780 = vadd.f32 %v779, %v409
        %v781 = vadd.f32 %v780, %v414
        %v782 = vadd.f32 %v781, %v419
        %v783 = vadd.f32 %v782, %v424
        %v784 = vadd.f32 %v783, %v429
        %v785 = vadd.f32 %v784, %v434
        %v786 = vadd.f32 %v785, %v439
        %v787 = vadd.f32 %v786, %v444
        %v788 = vadd.f32 %v787, %v449
        %v789 = vadd.f32 %v788, %v454
        %v790 = vadd.f32 %v789, %v459
        %v791 = vadd.f32 %v790, %v464
        %v792 = vadd.f32 %v791, %v469
        %v793 = vadd.f32 %v792, %v474
        %v794 = vadd.f32 %v793, %v479
        %v795 = vadd.f32 %v794, %v484
        %v796 = vadd.f32 %v795, %v489
        %v797 = vadd.f32 %v796, %v494
        %v798 = vadd.f32 %v797, %v499
        %v799 = vadd.f32 %v798, %v504
        %v800 = vadd.f32 %v799, %v509
        %v801 = vadd.f32 %v800, %v514
        %v802 = vadd.f32 %v801, %v519
        %v803 = vadd.f32 %v802, %v524
        %v804 = vadd.f32 %v803, %v529
        %v805 = vadd.f32 %v804, %v534
        %v806 = vadd.f32 %v805, %v539
        %v807 = vadd.f32 %v806, %v544
        %v808 = vadd.f32 %v807, %v549
        %v809 = vadd.f32 %v808, %v554
        %v810 = vadd.f32 %v809, %v559
        %v811 = vadd.f32 %v810, %v564
        %v812 = vadd.f32 %v811, %v569
        %v813 = vadd.f32 %v812, %v574
        %v814 = vadd.f32 %v813, %v579
        %v815 = vadd.f32 %v814, %v584
        %v816 = vadd.f32 %v815, %v589
        %v817 = vadd.f32 %v816, %v594
        %v818 = vadd.f32 %v817, %v599
        %v819 = vadd.f32 %v818, %v604
        %v820 = vadd.f32 %v819, %v609
        %v821 = vadd.f32 %v820, %v614
        %v822 = vadd.f32 %v821, %v619
        %v823 = vadd.f32 %v822, %v624
        %v824 = vadd.f32 %v823, %v629
        %v825 = vadd.f32 %v824, %v634
        %v826 = vadd.f32 %v825, %v639
        %v827 = vadd.f32 %v826, %v644
        %v828 = vadd.f32 %v827, %v649
        %v829 = vadd.f32 %v828, %v654
        %v830 = vadd.f32 %v829, %v659
        %v831 = vadd.f32 %v830, %v664
        %v832 = vadd.f32 %v831, %v669
        %v833 = vadd.f32 %v832, %v674
        %v834 = vadd.f32 %v833, %v679
        %v835 = vadd.f32 %v834, %v684
        %v836 = vadd.f32 %v835, %v689
        %v837 = vadd.f32 %v836, %v694
        %v838 = vadd.f32 %v837, %v699
        %v839 = vadd.f32 %v838, %v704
        %v840 = vadd.f32 %v839, %v709
        %v841 = vrot.slane %v840, 4
        %v842 = vadd.f32 %v840, %v841
        %v843 = vrot.slane %v842, 2
        %v844 = vadd.f32 %v842, %v843
        %v845 = vrot.slane %v844, 1
        %v846 = vadd.f32 %v844, %v845
        %v847 = vadd.f32 %v777, %v846
        %848 = vst [vmem:[#allocation3] sm:$0x1] %v847
        %v849 = vld [vmem:[#allocation4] sm:$0x1]
        %v850 = vmul.f32 %v394, %v394
        %v851 = vmul.f32 %v399, %v399
        %v852 = vmul.f32 %v404, %v404
        %v853 = vmul.f32 %v409, %v409
        %v854 = vmul.f32 %v414, %v414
        %v855 = vmul.f32 %v419, %v419
        %v856 = vmul.f32 %v424, %v424
        %v857 = vmul.f32 %v429, %v429
        %v858 = vmul.f32 %v434, %v434
        %v859 = vmul.f32 %v439, %v439
        %v860 = vmul.f32 %v444, %v444
        %v861 = vmul.f32 %v449, %v449
        %v862 = vmul.f32 %v454, %v454
        %v863 = vmul.f32 %v459, %v459
        %v864 = vmul.f32 %v464, %v464
        %v865 = vmul.f32 %v469, %v469
        %v866 = vmul.f32 %v474, %v474
        %v867 = vmul.f32 %v479, %v479
        %v868 = vmul.f32 %v484, %v484
        %v869 = vmul.f32 %v489, %v489
        %v870 = vmul.f32 %v494, %v494
        %v871 = vmul.f32 %v499, %v499
        %v872 = vmul.f32 %v504, %v504
        %v873 = vmul.f32 %v509, %v509
        %v874 = vmul.f32 %v514, %v514
        %v875 = vmul.f32 %v519, %v519
        %v876 = vmul.f32 %v524, %v524
        %v877 = vmul.f32 %v529, %v529
        %v878 = vmul.f32 %v534, %v534
        %v879 = vmul.f32 %v539, %v539
        %v880 = vmul.f32 %v544, %v544
        %v881 = vmul.f32 %v549, %v549
        %v882 = vmul.f32 %v554, %v554
        %v883 = vmul.f32 %v559, %v559
        %v884 = vmul.f32 %v564, %v564
        %v885 = vmul.f32 %v569, %v569
        %v886 = vmul.f32 %v574, %v574
        %v887 = vmul.f32 %v579, %v579
        %v888 = vmul.f32 %v584, %v584
        %v889 = vmul.f32 %v589, %v589
        %v890 = vmul.f32 %v594, %v594
        %v891 = vmul.f32 %v599, %v599
        %v892 = vmul.f32 %v604, %v604
        %v893 = vmul.f32 %v609, %v609
        %v894 = vmul.f32 %v614, %v614
        %v895 = vmul.f32 %v619, %v619
        %v896 = vmul.f32 %v624, %v624
        %v897 = vmul.f32 %v629, %v629
        %v898 = vmul.f32 %v634, %v634
        %v899 = vmul.f32 %v639, %v639
        %v900 = vmul.f32 %v644, %v644
        %v901 = vmul.f32 %v649, %v649
        %v902 = vmul.f32 %v654, %v654
        %v903 = vmul.f32 %v659, %v659
        %v904 = vmul.f32 %v664, %v664
        %v905 = vmul.f32 %v669, %v669
        %v906 = vmul.f32 %v674, %v674
        %v907 = vmul.f32 %v679, %v679
        %v908 = vmul.f32 %v684, %v684
        %v909 = vmul.f32 %v689, %v689
        %v910 = vmul.f32 %v694, %v694
        %v911 = vmul.f32 %v699, %v699
        %v912 = vmul.f32 %v704, %v704
        %v913 = vmul.f32 %v709, %v709
        %v914 = vadd.f32 %v850, %v851
        %v915 = vadd.f32 %v914, %v852
        %v916 = vadd.f32 %v915, %v853
        %v917 = vadd.f32 %v916, %v854
        %v918 = vadd.f32 %v917, %v855
        %v919 = vadd.f32 %v918, %v856
        %v920 = vadd.f32 %v919, %v857
        %v921 = vadd.f32 %v920, %v858
        %v922 = vadd.f32 %v921, %v859
        %v923 = vadd.f32 %v922, %v860
        %v924 = vadd.f32 %v923, %v861
        %v925 = vadd.f32 %v924, %v862
        %v926 = vadd.f32 %v925, %v863
        %v927 = vadd.f32 %v926, %v864
        %v928 = vadd.f32 %v927, %v865
        %v929 = vadd.f32 %v928, %v866
        %v930 = vadd.f32 %v929, %v867
        %v931 = vadd.f32 %v930, %v868
        %v932 = vadd.f32 %v931, %v869
        %v933 = vadd.f32 %v932, %v870
        %v934 = vadd.f32 %v933, %v871
        %v935 = vadd.f32 %v934, %v872
        %v936 = vadd.f32 %v935, %v873
        %v937 = vadd.f32 %v936, %v874
        %v938 = vadd.f32 %v937, %v875
        %v939 = vadd.f32 %v938, %v876
        %v940 = vadd.f32 %v939, %v877
        %v941 = vadd.f32 %v940, %v878
        %v942 = vadd.f32 %v941, %v879
        %v943 = vadd.f32 %v942, %v880
        %v944 = vadd.f32 %v943, %v881
        %v945 = vadd.f32 %v944, %v882
        %v946 = vadd.f32 %v945, %v883
        %v947 = vadd.f32 %v946, %v884
        %v948 = vadd.f32 %v947, %v885
        %v949 = vadd.f32 %v948, %v886
        %v950 = vadd.f32 %v949, %v887
        %v951 = vadd.f32 %v950, %v888
        %v952 = vadd.f32 %v951, %v889
        %v953 = vadd.f32 %v952, %v890
        %v954 = vadd.f32 %v953, %v891
        %v955 = vadd.f32 %v954, %v892
        %v956 = vadd.f32 %v955, %v893
        %v957 = vadd.f32 %v956, %v894
        %v958 = vadd.f32 %v957, %v895
        %v959 = vadd.f32 %v958, %v896
        %v960 = vadd.f32 %v959, %v897
        %v961 = vadd.f32 %v960, %v898
        %v962 = vadd.f32 %v961, %v899
        %v963 = vadd.f32 %v962, %v900
        %v964 = vadd.f32 %v963, %v901
        %v965 = vadd.f32 %v964, %v902
        %v966 = vadd.f32 %v965, %v903
        %v967 = vadd.f32 %v966, %v904
        %v968 = vadd.f32 %v967, %v905
        %v969 = vadd.f32 %v968, %v906
        %v970 = vadd.f32 %v969, %v907
        %v971 = vadd.f32 %v970, %v908
        %v972 = vadd.f32 %v971, %v909
        %v973 = vadd.f32 %v972, %v910
        %v974 = vadd.f32 %v973, %v911
        %v975 = vadd.f32 %v974, %v912
        %v976 = vadd.f32 %v975, %v913
        %v977 = vrot.slane %v976, 4
        %v978 = vadd.f32 %v976, %v977
        %v979 = vrot.slane %v978, 2
        %v980 = vadd.f32 %v978, %v979
        %v981 = vrot.slane %v980, 1
        %v982 = vadd.f32 %v980, %v981
        %v983 = vadd.f32 %v849, %v982
        %984 = vst [vmem:[#allocation4] sm:$0x1] %v983
      $region44: #{decoder_forward.1} parent=35 // pred_fallthru
        _
      // Predicated region
      $region45: #{decoder_forward.1} parent=35 // pred_check
        _
      $region46: #{decoder_forward.1} parent=35 // pred_check_branch
        %986 = sbr.rel (%p238) target = $region48
      $region47: #{decoder_forward.1} parent=35 // pred_region
        %v987 = vld [vmem:[#allocation3] sm:$0x1]
        %v988 = vmul.f32 %v987, 0.00038610038
        %v989 = vld [vmem:[#allocation4] sm:$0x1]
        %v990 = vmul.f32 %v989, 0.00038610038
        %v991 = vmul.f32 %v988, %v988
        %v992 = vsub.f32 %v990, %v991
        %v993 = vmax.f32 %v992, 0.0
        %v994 = vld [vmem:[%s2] sm:$0x1]
        %v995 = vadd.f32 %v993, 1e-05
        %v996 = vrsqrt.pop %v995
        %v997 = vmul.f32 %v994, %v996
        %998 = vst [vmem:[#allocation5] sm:$0x1] %v997
        %v999 = vld [vmem:[%s3] sm:$0x1]
        %v1000 = vmul.f32 %v988, %v997
        %v1001 = vsub.f32 %v999, %v1000
        %1002 = vst [vmem:[#allocation6] sm:$0x1] %v1001
      $region48: #{decoder_forward.1} parent=35 // pred_fallthru
        _
      // Predicated region
      $region49: #{decoder_forward.1} parent=35 // pred_check
        %p1003 = pneg %p237
      $region50: #{decoder_forward.1} parent=35 // pred_check_branch
        %1005 = sbr.rel (%p1003) target = $region52
      $region51: #{decoder_forward.1} parent=35 // pred_region
        %s1006 = scalar_lea.vmem [#allocation2], %s232
        %v1007 = vld [vmem:[%s1006] sm:$0xff]
        %v1008 = vld [vmem:[%s1006 + $0x8] sm:$0xff]
        %v1009 = vld [vmem:[%s1006 + $0x10] sm:$0xff]
        %v1010 = vld [vmem:[%s1006 + $0x18] sm:$0xff]
        %v1011 = vld [vmem:[%s1006 + $0x20] sm:$0xff]
        %v1012 = vld [vmem:[%s1006 + $0x28] sm:$0xff]
        %v1013 = vld [vmem:[%s1006 + $0x30] sm:$0xff]
        %v1014 = vld [vmem:[%s1006 + $0x38] sm:$0xff]
        %v1015 = vld [vmem:[%s1006 + $0x40] sm:$0xff]
        %v1016 = vld [vmem:[%s1006 + $0x48] sm:$0xff]
        %v1017 = vld [vmem:[%s1006 + $0x50] sm:$0xff]
        %v1018 = vld [vmem:[%s1006 + $0x58] sm:$0xff]
        %v1019 = vld [vmem:[%s1006 + $0x60] sm:$0xff]
        %v1020 = vld [vmem:[%s1006 + $0x68] sm:$0xff]
        %v1021 = vld [vmem:[%s1006 + $0x70] sm:$0xff]
        %v1022 = vld [vmem:[%s1006 + $0x78] sm:$0xff]
        %v1023 = vld [vmem:[%s1006 + $0x80] sm:$0xff]
        %v1024 = vld [vmem:[%s1006 + $0x88] sm:$0xff]
        %v1025 = vld [vmem:[%s1006 + $0x90] sm:$0xff]
        %v1026 = vld [vmem:[%s1006 + $0x98] sm:$0xff]
        %v1027 = vld [vmem:[%s1006 + $0xa0] sm:$0xff]
        %v1028 = vld [vmem:[%s1006 + $0xa8] sm:$0xff]
        %v1029 = vld [vmem:[%s1006 + $0xb0] sm:$0xff]
        %v1030 = vld [vmem:[%s1006 + $0xb8] sm:$0xff]
        %v1031 = vld [vmem:[%s1006 + $0xc0] sm:$0xff]
        %v1032 = vld [vmem:[%s1006 + $0xc8] sm:$0xff]
        %v1033 = vld [vmem:[%s1006 + $0xd0] sm:$0xff]
        %v1034 = vld [vmem:[%s1006 + $0xd8] sm:$0xff]
        %v1035 = vld [vmem:[%s1006 + $0xe0] sm:$0xff]
        %v1036 = vld [vmem:[%s1006 + $0xe8] sm:$0xff]
        %v1037 = vld [vmem:[%s1006 + $0xf0] sm:$0xff]
        %v1038 = vld [vmem:[%s1006 + $0xf8] sm:$0xff]
        %v1039 = vld [vmem:[%s1006 + $0x100] sm:$0xff]
        %v1040 = vld [vmem:[%s1006 + $0x108] sm:$0xff]
        %v1041 = vld [vmem:[%s1006 + $0x110] sm:$0xff]
        %v1042 = vld [vmem:[%s1006 + $0x118] sm:$0xff]
        %v1043 = vld [vmem:[%s1006 + $0x120] sm:$0xff]
        %v1044 = vld [vmem:[%s1006 + $0x128] sm:$0xff]
        %v1045 = vld [vmem:[%s1006 + $0x130] sm:$0xff]
        %v1046 = vld [vmem:[%s1006 + $0x138] sm:$0xff]
        %v1047 = vld [vmem:[%s1006 + $0x140] sm:$0xff]
        %v1048 = vld [vmem:[%s1006 + $0x148] sm:$0xff]
        %v1049 = vld [vmem:[%s1006 + $0x150] sm:$0xff]
        %v1050 = vld [vmem:[%s1006 + $0x158] sm:$0xff]
        %v1051 = vld [vmem:[%s1006 + $0x160] sm:$0xff]
        %v1052 = vld [vmem:[%s1006 + $0x168] sm:$0xff]
        %v1053 = vld [vmem:[%s1006 + $0x170] sm:$0xff]
        %v1054 = vld [vmem:[%s1006 + $0x178] sm:$0xff]
        %v1055 = vld [vmem:[%s1006 + $0x180] sm:$0xff]
        %v1056 = vld [vmem:[%s1006 + $0x188] sm:$0xff]
        %v1057 = vld [vmem:[%s1006 + $0x190] sm:$0xff]
        %v1058 = vld [vmem:[%s1006 + $0x198] sm:$0xff]
        %v1059 = vld [vmem:[%s1006 + $0x1a0] sm:$0xff]
        %v1060 = vld [vmem:[%s1006 + $0x1a8] sm:$0xff]
        %v1061 = vld [vmem:[%s1006 + $0x1b0] sm:$0xff]
        %v1062 = vld [vmem:[%s1006 + $0x1b8] sm:$0xff]
        %v1063 = vld [vmem:[%s1006 + $0x1c0] sm:$0xff]
        %v1064 = vld [vmem:[%s1006 + $0x1c8] sm:$0xff]
        %v1065 = vld [vmem:[%s1006 + $0x1d0] sm:$0xff]
        %v1066 = vld [vmem:[%s1006 + $0x1d8] sm:$0xff]
        %v1067 = vld [vmem:[%s1006 + $0x1e0] sm:$0xff]
        %v1068 = vld [vmem:[%s1006 + $0x1e8] sm:$0xff]
        %v1069 = vld [vmem:[%s1006 + $0x1f0] sm:$0xff]
        %v1070 = vld [vmem:[%s1006 + $0x1f8] sm:$0xff]
        %v1071 = vld [vmem:[#allocation5] sm:$0x1]
        %v1073 = vlaneseq
        %v1074 = vshrl.u32 %v1073, 7
        %v1075 = vsub.s32 0, %v1074
        %v1076 = vrot.slane %v1071, %v1075
        %v1078 = vmul.f32 %v1007, %v1076
        %v1079 = vmul.f32 %v1008, %v1076
        %v1080 = vmul.f32 %v1009, %v1076
        %v1081 = vmul.f32 %v1010, %v1076
        %v1082 = vmul.f32 %v1011, %v1076
        %v1083 = vmul.f32 %v1012, %v1076
        %v1084 = vmul.f32 %v1013, %v1076
        %v1085 = vmul.f32 %v1014, %v1076
        %v1086 = vmul.f32 %v1015, %v1076
        %v1087 = vmul.f32 %v1016, %v1076
        %v1088 = vmul.f32 %v1017, %v1076
        %v1089 = vmul.f32 %v1018, %v1076
        %v1090 = vmul.f32 %v1019, %v1076
        %v1091 = vmul.f32 %v1020, %v1076
        %v1092 = vmul.f32 %v1021, %v1076
        %v1093 = vmul.f32 %v1022, %v1076
        %v1094 = vmul.f32 %v1023, %v1076
        %v1095 = vmul.f32 %v1024, %v1076
        %v1096 = vmul.f32 %v1025, %v1076
        %v1097 = vmul.f32 %v1026, %v1076
        %v1098 = vmul.f32 %v1027, %v1076
        %v1099 = vmul.f32 %v1028, %v1076
        %v1100 = vmul.f32 %v1029, %v1076
        %v1101 = vmul.f32 %v1030, %v1076
        %v1102 = vmul.f32 %v1031, %v1076
        %v1103 = vmul.f32 %v1032, %v1076
        %v1104 = vmul.f32 %v1033, %v1076
        %v1105 = vmul.f32 %v1034, %v1076
        %v1106 = vmul.f32 %v1035, %v1076
        %v1107 = vmul.f32 %v1036, %v1076
        %v1108 = vmul.f32 %v1037, %v1076
        %v1109 = vmul.f32 %v1038, %v1076
        %v1110 = vmul.f32 %v1039, %v1076
        %v1111 = vmul.f32 %v1040, %v1076
        %v1112 = vmul.f32 %v1041, %v1076
        %v1113 = vmul.f32 %v1042, %v1076
        %v1114 = vmul.f32 %v1043, %v1076
        %v1115 = vmul.f32 %v1044, %v1076
        %v1116 = vmul.f32 %v1045, %v1076
        %v1117 = vmul.f32 %v1046, %v1076
        %v1118 = vmul.f32 %v1047, %v1076
        %v1119 = vmul.f32 %v1048, %v1076
        %v1120 = vmul.f32 %v1049, %v1076
        %v1121 = vmul.f32 %v1050, %v1076
        %v1122 = vmul.f32 %v1051, %v1076
        %v1123 = vmul.f32 %v1052, %v1076
        %v1124 = vmul.f32 %v1053, %v1076
        %v1125 = vmul.f32 %v1054, %v1076
        %v1126 = vmul.f32 %v1055, %v1076
        %v1127 = vmul.f32 %v1056, %v1076
        %v1128 = vmul.f32 %v1057, %v1076
        %v1129 = vmul.f32 %v1058, %v1076
        %v1130 = vmul.f32 %v1059, %v1076
        %v1131 = vmul.f32 %v1060, %v1076
        %v1132 = vmul.f32 %v1061, %v1076
        %v1133 = vmul.f32 %v1062, %v1076
        %v1134 = vmul.f32 %v1063, %v1076
        %v1135 = vmul.f32 %v1064, %v1076
        %v1136 = vmul.f32 %v1065, %v1076
        %v1137 = vmul.f32 %v1066, %v1076
        %v1138 = vmul.f32 %v1067, %v1076
        %v1139 = vmul.f32 %v1068, %v1076
        %v1140 = vmul.f32 %v1069, %v1076
        %v1141 = vmul.f32 %v1070, %v1076
        %v1142 = vld [vmem:[#allocation6] sm:$0x1]
        %v1144 = vlaneseq
        %v1145 = vshrl.u32 %v1144, 7
        %v1146 = vsub.s32 0, %v1145
        %v1147 = vrot.slane %v1142, %v1146
        %v1149 = vadd.f32 %v1078, %v1147
        %v1150 = vadd.f32 %v1079, %v1147
        %v1151 = vadd.f32 %v1080, %v1147
        %v1152 = vadd.f32 %v1081, %v1147
        %v1153 = vadd.f32 %v1082, %v1147
        %v1154 = vadd.f32 %v1083, %v1147
        %v1155 = vadd.f32 %v1084, %v1147
        %v1156 = vadd.f32 %v1085, %v1147
        %v1157 = vadd.f32 %v1086, %v1147
        %v1158 = vadd.f32 %v1087, %v1147
        %v1159 = vadd.f32 %v1088, %v1147
        %v1160 = vadd.f32 %v1089, %v1147
        %v1161 = vadd.f32 %v1090, %v1147
        %v1162 = vadd.f32 %v1091, %v1147
        %v1163 = vadd.f32 %v1092, %v1147
        %v1164 = vadd.f32 %v1093, %v1147
        %v1165 = vadd.f32 %v1094, %v1147
        %v1166 = vadd.f32 %v1095, %v1147
        %v1167 = vadd.f32 %v1096, %v1147
        %v1168 = vadd.f32 %v1097, %v1147
        %v1169 = vadd.f32 %v1098, %v1147
        %v1170 = vadd.f32 %v1099, %v1147
        %v1171 = vadd.f32 %v1100, %v1147
        %v1172 = vadd.f32 %v1101, %v1147
        %v1173 = vadd.f32 %v1102, %v1147
        %v1174 = vadd.f32 %v1103, %v1147
        %v1175 = vadd.f32 %v1104, %v1147
        %v1176 = vadd.f32 %v1105, %v1147
        %v1177 = vadd.f32 %v1106, %v1147
        %v1178 = vadd.f32 %v1107, %v1147
        %v1179 = vadd.f32 %v1108, %v1147
        %v1180 = vadd.f32 %v1109, %v1147
        %v1181 = vadd.f32 %v1110, %v1147
        %v1182 = vadd.f32 %v1111, %v1147
        %v1183 = vadd.f32 %v1112, %v1147
        %v1184 = vadd.f32 %v1113, %v1147
        %v1185 = vadd.f32 %v1114, %v1147
        %v1186 = vadd.f32 %v1115, %v1147
        %v1187 = vadd.f32 %v1116, %v1147
        %v1188 = vadd.f32 %v1117, %v1147
        %v1189 = vadd.f32 %v1118, %v1147
        %v1190 = vadd.f32 %v1119, %v1147
        %v1191 = vadd.f32 %v1120, %v1147
        %v1192 = vadd.f32 %v1121, %v1147
        %v1193 = vadd.f32 %v1122, %v1147
        %v1194 = vadd.f32 %v1123, %v1147
        %v1195 = vadd.f32 %v1124, %v1147
        %v1196 = vadd.f32 %v1125, %v1147
        %v1197 = vadd.f32 %v1126, %v1147
        %v1198 = vadd.f32 %v1127, %v1147
        %v1199 = vadd.f32 %v1128, %v1147
        %v1200 = vadd.f32 %v1129, %v1147
        %v1201 = vadd.f32 %v1130, %v1147
        %v1202 = vadd.f32 %v1131, %v1147
        %v1203 = vadd.f32 %v1132, %v1147
        %v1204 = vadd.f32 %v1133, %v1147
        %v1205 = vadd.f32 %v1134, %v1147
        %v1206 = vadd.f32 %v1135, %v1147
        %v1207 = vadd.f32 %v1136, %v1147
        %v1208 = vadd.f32 %v1137, %v1147
        %v1209 = vadd.f32 %v1138, %v1147
        %v1210 = vadd.f32 %v1139, %v1147
        %v1211 = vadd.f32 %v1140, %v1147
        %v1212 = vadd.f32 %v1141, %v1147
        %vm1213 = vcmp.ge.f32.partialorder %v1149, 0.0
        %vm1214 = vcmp.ge.f32.partialorder %v1150, 0.0
        %vm1215 = vcmp.ge.f32.partialorder %v1151, 0.0
        %vm1216 = vcmp.ge.f32.partialorder %v1152, 0.0
        %vm1217 = vcmp.ge.f32.partialorder %v1153, 0.0
        %vm1218 = vcmp.ge.f32.partialorder %v1154, 0.0
        %vm1219 = vcmp.ge.f32.partialorder %v1155, 0.0
        %vm1220 = vcmp.ge.f32.partialorder %v1156, 0.0
        %vm1221 = vcmp.ge.f32.partialorder %v1157, 0.0
        %vm1222 = vcmp.ge.f32.partialorder %v1158, 0.0
        %vm1223 = vcmp.ge.f32.partialorder %v1159, 0.0
        %vm1224 = vcmp.ge.f32.partialorder %v1160, 0.0
        %vm1225 = vcmp.ge.f32.partialorder %v1161, 0.0
        %vm1226 = vcmp.ge.f32.partialorder %v1162, 0.0
        %vm1227 = vcmp.ge.f32.partialorder %v1163, 0.0
        %vm1228 = vcmp.ge.f32.partialorder %v1164, 0.0
        %vm1229 = vcmp.ge.f32.partialorder %v1165, 0.0
        %vm1230 = vcmp.ge.f32.partialorder %v1166, 0.0
        %vm1231 = vcmp.ge.f32.partialorder %v1167, 0.0
        %vm1232 = vcmp.ge.f32.partialorder %v1168, 0.0
        %vm1233 = vcmp.ge.f32.partialorder %v1169, 0.0
        %vm1234 = vcmp.ge.f32.partialorder %v1170, 0.0
        %vm1235 = vcmp.ge.f32.partialorder %v1171, 0.0
        %vm1236 = vcmp.ge.f32.partialorder %v1172, 0.0
        %vm1237 = vcmp.ge.f32.partialorder %v1173, 0.0
        %vm1238 = vcmp.ge.f32.partialorder %v1174, 0.0
        %vm1239 = vcmp.ge.f32.partialorder %v1175, 0.0
        %vm1240 = vcmp.ge.f32.partialorder %v1176, 0.0
        %vm1241 = vcmp.ge.f32.partialorder %v1177, 0.0
        %vm1242 = vcmp.ge.f32.partialorder %v1178, 0.0
        %vm1243 = vcmp.ge.f32.partialorder %v1179, 0.0
        %vm1244 = vcmp.ge.f32.partialorder %v1180, 0.0
        %vm1245 = vcmp.ge.f32.partialorder %v1181, 0.0
        %vm1246 = vcmp.ge.f32.partialorder %v1182, 0.0
        %vm1247 = vcmp.ge.f32.partialorder %v1183, 0.0
        %vm1248 = vcmp.ge.f32.partialorder %v1184, 0.0
        %vm1249 = vcmp.ge.f32.partialorder %v1185, 0.0
        %vm1250 = vcmp.ge.f32.partialorder %v1186, 0.0
        %vm1251 = vcmp.ge.f32.partialorder %v1187, 0.0
        %vm1252 = vcmp.ge.f32.partialorder %v1188, 0.0
        %vm1253 = vcmp.ge.f32.partialorder %v1189, 0.0
        %vm1254 = vcmp.ge.f32.partialorder %v1190, 0.0
        %vm1255 = vcmp.ge.f32.partialorder %v1191, 0.0
        %vm1256 = vcmp.ge.f32.partialorder %v1192, 0.0
        %vm1257 = vcmp.ge.f32.partialorder %v1193, 0.0
        %vm1258 = vcmp.ge.f32.partialorder %v1194, 0.0
        %vm1259 = vcmp.ge.f32.partialorder %v1195, 0.0
        %vm1260 = vcmp.ge.f32.partialorder %v1196, 0.0
        %vm1261 = vcmp.ge.f32.partialorder %v1197, 0.0
        %vm1262 = vcmp.ge.f32.partialorder %v1198, 0.0
        %vm1263 = vcmp.ge.f32.partialorder %v1199, 0.0
        %vm1264 = vcmp.ge.f32.partialorder %v1200, 0.0
        %vm1265 = vcmp.ge.f32.partialorder %v1201, 0.0
        %vm1266 = vcmp.ge.f32.partialorder %v1202, 0.0
        %vm1267 = vcmp.ge.f32.partialorder %v1203, 0.0
        %vm1268 = vcmp.ge.f32.partialorder %v1204, 0.0
        %vm1269 = vcmp.ge.f32.partialorder %v1205, 0.0
        %vm1270 = vcmp.ge.f32.partialorder %v1206, 0.0
        %vm1271 = vcmp.ge.f32.partialorder %v1207, 0.0
        %vm1272 = vcmp.ge.f32.partialorder %v1208, 0.0
        %vm1273 = vcmp.ge.f32.partialorder %v1209, 0.0
        %vm1274 = vcmp.ge.f32.partialorder %v1210, 0.0
        %vm1275 = vcmp.ge.f32.partialorder %v1211, 0.0
        %vm1276 = vcmp.ge.f32.partialorder %v1212, 0.0
        %v1277 = vmul.f32 %v1149, 0.01
        %v1278 = vmul.f32 %v1150, 0.01
        %v1279 = vmul.f32 %v1151, 0.01
        %v1280 = vmul.f32 %v1152, 0.01
        %v1281 = vmul.f32 %v1153, 0.01
        %v1282 = vmul.f32 %v1154, 0.01
        %v1283 = vmul.f32 %v1155, 0.01
        %v1284 = vmul.f32 %v1156, 0.01
        %v1285 = vmul.f32 %v1157, 0.01
        %v1286 = vmul.f32 %v1158, 0.01
        %v1287 = vmul.f32 %v1159, 0.01
        %v1288 = vmul.f32 %v1160, 0.01
        %v1289 = vmul.f32 %v1161, 0.01
        %v1290 = vmul.f32 %v1162, 0.01
        %v1291 = vmul.f32 %v1163, 0.01
        %v1292 = vmul.f32 %v1164, 0.01
        %v1293 = vmul.f32 %v1165, 0.01
        %v1294 = vmul.f32 %v1166, 0.01
        %v1295 = vmul.f32 %v1167, 0.01
        %v1296 = vmul.f32 %v1168, 0.01
        %v1297 = vmul.f32 %v1169, 0.01
        %v1298 = vmul.f32 %v1170, 0.01
        %v1299 = vmul.f32 %v1171, 0.01
        %v1300 = vmul.f32 %v1172, 0.01
        %v1301 = vmul.f32 %v1173, 0.01
        %v1302 = vmul.f32 %v1174, 0.01
        %v1303 = vmul.f32 %v1175, 0.01
        %v1304 = vmul.f32 %v1176, 0.01
        %v1305 = vmul.f32 %v1177, 0.01
        %v1306 = vmul.f32 %v1178, 0.01
        %v1307 = vmul.f32 %v1179, 0.01
        %v1308 = vmul.f32 %v1180, 0.01
        %v1309 = vmul.f32 %v1181, 0.01
        %v1310 = vmul.f32 %v1182, 0.01
        %v1311 = vmul.f32 %v1183, 0.01
        %v1312 = vmul.f32 %v1184, 0.01
        %v1313 = vmul.f32 %v1185, 0.01
        %v1314 = vmul.f32 %v1186, 0.01
        %v1315 = vmul.f32 %v1187, 0.01
        %v1316 = vmul.f32 %v1188, 0.01
        %v1317 = vmul.f32 %v1189, 0.01
        %v1318 = vmul.f32 %v1190, 0.01
        %v1319 = vmul.f32 %v1191, 0.01
        %v1320 = vmul.f32 %v1192, 0.01
        %v1321 = vmul.f32 %v1193, 0.01
        %v1322 = vmul.f32 %v1194, 0.01
        %v1323 = vmul.f32 %v1195, 0.01
        %v1324 = vmul.f32 %v1196, 0.01
        %v1325 = vmul.f32 %v1197, 0.01
        %v1326 = vmul.f32 %v1198, 0.01
        %v1327 = vmul.f32 %v1199, 0.01
        %v1328 = vmul.f32 %v1200, 0.01
        %v1329 = vmul.f32 %v1201, 0.01
        %v1330 = vmul.f32 %v1202, 0.01
        %v1331 = vmul.f32 %v1203, 0.01
        %v1332 = vmul.f32 %v1204, 0.01
        %v1333 = vmul.f32 %v1205, 0.01
        %v1334 = vmul.f32 %v1206, 0.01
        %v1335 = vmul.f32 %v1207, 0.01
        %v1336 = vmul.f32 %v1208, 0.01
        %v1337 = vmul.f32 %v1209, 0.01
        %v1338 = vmul.f32 %v1210, 0.01
        %v1339 = vmul.f32 %v1211, 0.01
        %v1340 = vmul.f32 %v1212, 0.01
        %v1341 = vsel %vm1213, %v1149, %v1277
        %v1342 = vsel %vm1214, %v1150, %v1278
        %v1343 = vsel %vm1215, %v1151, %v1279
        %v1344 = vsel %vm1216, %v1152, %v1280
        %v1345 = vsel %vm1217, %v1153, %v1281
        %v1346 = vsel %vm1218, %v1154, %v1282
        %v1347 = vsel %vm1219, %v1155, %v1283
        %v1348 = vsel %vm1220, %v1156, %v1284
        %v1349 = vsel %vm1221, %v1157, %v1285
        %v1350 = vsel %vm1222, %v1158, %v1286
        %v1351 = vsel %vm1223, %v1159, %v1287
        %v1352 = vsel %vm1224, %v1160, %v1288
        %v1353 = vsel %vm1225, %v1161, %v1289
        %v1354 = vsel %vm1226, %v1162, %v1290
        %v1355 = vsel %vm1227, %v1163, %v1291
        %v1356 = vsel %vm1228, %v1164, %v1292
        %v1357 = vsel %vm1229, %v1165, %v1293
        %v1358 = vsel %vm1230, %v1166, %v1294
        %v1359 = vsel %vm1231, %v1167, %v1295
        %v1360 = vsel %vm1232, %v1168, %v1296
        %v1361 = vsel %vm1233, %v1169, %v1297
        %v1362 = vsel %vm1234, %v1170, %v1298
        %v1363 = vsel %vm1235, %v1171, %v1299
        %v1364 = vsel %vm1236, %v1172, %v1300
        %v1365 = vsel %vm1237, %v1173, %v1301
        %v1366 = vsel %vm1238, %v1174, %v1302
        %v1367 = vsel %vm1239, %v1175, %v1303
        %v1368 = vsel %vm1240, %v1176, %v1304
        %v1369 = vsel %vm1241, %v1177, %v1305
        %v1370 = vsel %vm1242, %v1178, %v1306
        %v1371 = vsel %vm1243, %v1179, %v1307
        %v1372 = vsel %vm1244, %v1180, %v1308
        %v1373 = vsel %vm1245, %v1181, %v1309
        %v1374 = vsel %vm1246, %v1182, %v1310
        %v1375 = vsel %vm1247, %v1183, %v1311
        %v1376 = vsel %vm1248, %v1184, %v1312
        %v1377 = vsel %vm1249, %v1185, %v1313
        %v1378 = vsel %vm1250, %v1186, %v1314
        %v1379 = vsel %vm1251, %v1187, %v1315
        %v1380 = vsel %vm1252, %v1188, %v1316
        %v1381 = vsel %vm1253, %v1189, %v1317
        %v1382 = vsel %vm1254, %v1190, %v1318
        %v1383 = vsel %vm1255, %v1191, %v1319
        %v1384 = vsel %vm1256, %v1192, %v1320
        %v1385 = vsel %vm1257, %v1193, %v1321
        %v1386 = vsel %vm1258, %v1194, %v1322
        %v1387 = vsel %vm1259, %v1195, %v1323
        %v1388 = vsel %vm1260, %v1196, %v1324
        %v1389 = vsel %vm1261, %v1197, %v1325
        %v1390 = vsel %vm1262, %v1198, %v1326
        %v1391 = vsel %vm1263, %v1199, %v1327
        %v1392 = vsel %vm1264, %v1200, %v1328
        %v1393 = vsel %vm1265, %v1201, %v1329
        %v1394 = vsel %vm1266, %v1202, %v1330
        %v1395 = vsel %vm1267, %v1203, %v1331
        %v1396 = vsel %vm1268, %v1204, %v1332
        %v1397 = vsel %vm1269, %v1205, %v1333
        %v1398 = vsel %vm1270, %v1206, %v1334
        %v1399 = vsel %vm1271, %v1207, %v1335
        %v1400 = vsel %vm1272, %v1208, %v1336
        %v1401 = vsel %vm1273, %v1209, %v1337
        %v1402 = vsel %vm1274, %v1210, %v1338
        %v1403 = vsel %vm1275, %v1211, %v1339
        %v1404 = vsel %vm1276, %v1212, %v1340
        %1405 = vst [vmem:[%s229] sm:$0xff] %v1341
        %1406 = vst [vmem:[%s229 + $0x8] sm:$0xff] %v1342
        %1407 = vst [vmem:[%s229 + $0x10] sm:$0xff] %v1343
        %1408 = vst [vmem:[%s229 + $0x18] sm:$0xff] %v1344
        %1409 = vst [vmem:[%s229 + $0x20] sm:$0xff] %v1345
        %1410 = vst [vmem:[%s229 + $0x28] sm:$0xff] %v1346
        %1411 = vst [vmem:[%s229 + $0x30] sm:$0xff] %v1347
        %1412 = vst [vmem:[%s229 + $0x38] sm:$0xff] %v1348
        %1413 = vst [vmem:[%s229 + $0x40] sm:$0xff] %v1349
        %1414 = vst [vmem:[%s229 + $0x48] sm:$0xff] %v1350
        %1415 = vst [vmem:[%s229 + $0x50] sm:$0xff] %v1351
        %1416 = vst [vmem:[%s229 + $0x58] sm:$0xff] %v1352
        %1417 = vst [vmem:[%s229 + $0x60] sm:$0xff] %v1353
        %1418 = vst [vmem:[%s229 + $0x68] sm:$0xff] %v1354
        %1419 = vst [vmem:[%s229 + $0x70] sm:$0xff] %v1355
        %1420 = vst [vmem:[%s229 + $0x78] sm:$0xff] %v1356
        %1421 = vst [vmem:[%s229 + $0x80] sm:$0xff] %v1357
        %1422 = vst [vmem:[%s229 + $0x88] sm:$0xff] %v1358
        %1423 = vst [vmem:[%s229 + $0x90] sm:$0xff] %v1359
        %1424 = vst [vmem:[%s229 + $0x98] sm:$0xff] %v1360
        %1425 = vst [vmem:[%s229 + $0xa0] sm:$0xff] %v1361
        %1426 = vst [vmem:[%s229 + $0xa8] sm:$0xff] %v1362
        %1427 = vst [vmem:[%s229 + $0xb0] sm:$0xff] %v1363
        %1428 = vst [vmem:[%s229 + $0xb8] sm:$0xff] %v1364
        %1429 = vst [vmem:[%s229 + $0xc0] sm:$0xff] %v1365
        %1430 = vst [vmem:[%s229 + $0xc8] sm:$0xff] %v1366
        %1431 = vst [vmem:[%s229 + $0xd0] sm:$0xff] %v1367
        %1432 = vst [vmem:[%s229 + $0xd8] sm:$0xff] %v1368
        %1433 = vst [vmem:[%s229 + $0xe0] sm:$0xff] %v1369
        %1434 = vst [vmem:[%s229 + $0xe8] sm:$0xff] %v1370
        %1435 = vst [vmem:[%s229 + $0xf0] sm:$0xff] %v1371
        %1436 = vst [vmem:[%s229 + $0xf8] sm:$0xff] %v1372
        %1437 = vst [vmem:[%s229 + $0x100] sm:$0xff] %v1373
        %1438 = vst [vmem:[%s229 + $0x108] sm:$0xff] %v1374
        %1439 = vst [vmem:[%s229 + $0x110] sm:$0xff] %v1375
        %1440 = vst [vmem:[%s229 + $0x118] sm:$0xff] %v1376
        %1441 = vst [vmem:[%s229 + $0x120] sm:$0xff] %v1377
        %1442 = vst [vmem:[%s229 + $0x128] sm:$0xff] %v1378
        %1443 = vst [vmem:[%s229 + $0x130] sm:$0xff] %v1379
        %1444 = vst [vmem:[%s229 + $0x138] sm:$0xff] %v1380
        %1445 = vst [vmem:[%s229 + $0x140] sm:$0xff] %v1381
        %1446 = vst [vmem:[%s229 + $0x148] sm:$0xff] %v1382
        %1447 = vst [vmem:[%s229 + $0x150] sm:$0xff] %v1383
        %1448 = vst [vmem:[%s229 + $0x158] sm:$0xff] %v1384
        %1449 = vst [vmem:[%s229 + $0x160] sm:$0xff] %v1385
        %1450 = vst [vmem:[%s229 + $0x168] sm:$0xff] %v1386
        %1451 = vst [vmem:[%s229 + $0x170] sm:$0xff] %v1387
        %1452 = vst [vmem:[%s229 + $0x178] sm:$0xff] %v1388
        %1453 = vst [vmem:[%s229 + $0x180] sm:$0xff] %v1389
        %1454 = vst [vmem:[%s229 + $0x188] sm:$0xff] %v1390
        %1455 = vst [vmem:[%s229 + $0x190] sm:$0xff] %v1391
        %1456 = vst [vmem:[%s229 + $0x198] sm:$0xff] %v1392
        %1457 = vst [vmem:[%s229 + $0x1a0] sm:$0xff] %v1393
        %1458 = vst [vmem:[%s229 + $0x1a8] sm:$0xff] %v1394
        %1459 = vst [vmem:[%s229 + $0x1b0] sm:$0xff] %v1395
        %1460 = vst [vmem:[%s229 + $0x1b8] sm:$0xff] %v1396
        %1461 = vst [vmem:[%s229 + $0x1c0] sm:$0xff] %v1397
        %1462 = vst [vmem:[%s229 + $0x1c8] sm:$0xff] %v1398
        %1463 = vst [vmem:[%s229 + $0x1d0] sm:$0xff] %v1399
        %1464 = vst [vmem:[%s229 + $0x1d8] sm:$0xff] %v1400
        %1465 = vst [vmem:[%s229 + $0x1e0] sm:$0xff] %v1401
        %1466 = vst [vmem:[%s229 + $0x1e8] sm:$0xff] %v1402
        %1467 = vst [vmem:[%s229 + $0x1f0] sm:$0xff] %v1403
        %1468 = vst [vmem:[%s229 + $0x1f8] sm:$0xff] %v1404
      $region52: #{decoder_forward.1} parent=35 // pred_fallthru
        _
      %s1469 = smul.u32 %s20, %s19
      %s1470 = smul.u32 64, %s1469
      %p1471 = scmp.lt.s32.totalorder %s1470, 383
      %s1472 = scalar_select %p1471, %s1470, 383
      %s1473 = smul.addr %s1472, 8
      %s1474 = scalar_lea.vmem %s4, %s1473
      // Predicated region
      $region53: #{decoder_forward.1} parent=35 // pred_check
        %p1475 = pneg %p140
      $region54: #{decoder_forward.1} parent=35 // pred_check_branch
        %1477 = sbr.rel (%p1475) target = $region56
      $region55: #{decoder_forward.1} parent=35 // pred_region
        %s1478 = smul.u32 %s20, %s19
        %s1479 = smul.u32 64, %s1478
      $region56: #{decoder_forward.1} parent=35 // pred_fallthru
        _
    $region36: #{decoder_forward.1} parent=5 // pred_fallthru
      _
    %p1480 = scmp.le.s32.totalorder 2, %s10
    // Predicated region
    $region57: #{decoder_forward.1} parent=5 // pred_check
      %p1481 = pneg %p1480
    $region58: #{decoder_forward.1} parent=5 // pred_check_branch
      %1483 = sbr.rel (%p1481) target = $region60
    $region59: #{decoder_forward.1} parent=5 // pred_region
      %s1484 = ssub.s32 %s10, 2
      // Predicated region
      $region61: #{decoder_forward.1} parent=59 // pred_check
        %p1485 = pneg %p146
      $region62: #{decoder_forward.1} parent=59 // pred_check_branch
        %1487 = sbr.rel (%p1485) target = $region64
      $region63: #{decoder_forward.1} parent=59 // pred_region
        %s1488 = smul.u32 %s22, %s21
        %s1489 = smul.u32 64, %s1488
        %p1490 = scmp.lt.s32.totalorder %s1489, 383
        %s1491 = scalar_select %p1490, %s1489, 383
        %s1492 = smul.addr %s1491, 8
        %s1493 = scalar_lea.vmem %s4, %s1492
      $region64: #{decoder_forward.1} parent=59 // pred_fallthru
        _
    $region60: #{decoder_forward.1} parent=5 // pred_fallthru
      _
  $region6: #{decoder_forward.1} parent=0 // loop_footer
    %s14 = sadd.s32 1, %s10
  $region7: #{decoder_forward.1} parent=0 // loop_footer_branch
    %9 = sbr.rel target = $region3
  $region8: #{decoder_forward.1} parent=0 // loop_exit
    _

</llo_original>
